<compile_context>
chip_gen: v7x
topology: tpu7x:2x2x1
jax: 0.10.0
libtpu: 0.0.40
codegen_flags: <defaults>
</compile_context>

<pallas_src>
import functools

import jax
import jax.numpy as jnp
from jax.experimental import pallas as pl
from jax.experimental.pallas import tpu as pltpu

X_SIZE = 21      # len(inps) in the reference script
HIDDEN = 32
NUM_LAYERS = 2
SEQ = 8
BATCH = 2


# ----------------------------------------------------------------------------
# Kernel
# ----------------------------------------------------------------------------
def lstm_kernel(xf_ref,      # (SEQ*BATCH, X_SIZE)
                wx_ref,      # (X_SIZE, 8H)  layer-0 input weights, layer-1 cols = 0
                wf_ref,      # (2H, 8H)      fused recurrent weights (rows: [h0 | h1])
                bias_ref,    # (1, 8H)       folded biases of both layers
                wlin_ref,    # (1, H)        output projection row
                blin_ref,    # (1, 1)
                out_ref,     # (SEQ*BATCH, 1)
                *, seq):
    """Fused 2-layer LSTM + Linear + sigmoid.

    Every 256-wide "fused" vector uses the gate-interleaved column layout
    (32 lanes per block):   [ i0 | i1 | f0 | f1 | g0 | g1 | o0 | o1 ]
    State layout of hboth / cboth (BATCH, 64):  [ h0 | h1 ]  /  [ c0 | c1 ],
    which is exactly the lhs of the next step's fused matmul.
    """
    nrows = xf_ref.shape[0]
    batch = nrows // seq
    H2 = 2 * HIDDEN

    def sig(v):
        # sigmoid via the EUP tanh: no f32 divide on the VPU path.
        return 0.5 * jnp.tanh(0.5 * v) + 0.5

    def cell(gates, cboth):
        # gates: (batch, 8H) interleaved; one wide sigmoid + one tanh on g-block.
        sg = sig(gates)
        g = jnp.tanh(gates[:, 4 * HIDDEN:6 * HIDDEN])      # [g0 | g1]
        i = sg[:, 0:2 * HIDDEN]                            # [i0 | i1]
        f = sg[:, 2 * HIDDEN:4 * HIDDEN]                   # [f0 | f1]
        o = sg[:, 6 * HIDDEN:8 * HIDDEN]                   # [o0 | o1]
        c_new = f * cboth + i * g
        h_new = o * jnp.tanh(c_new)
        return h_new, c_new

    # --- off the serial chain: layer-0 input projection for ALL timesteps ----
    # Layer-1 columns of wx are zero and both layers' biases ride along, so
    # a_all[rows of step s] is the full additive (non-recurrent) gate term.
    a_all = (jnp.dot(xf_ref[...], wx_ref[...],
                     preferred_element_type=jnp.float32) + bias_ref[...])

    hboth = jnp.zeros((batch, H2), jnp.float32)
    cboth = jnp.zeros((batch, H2), jnp.float32)

    # --- wavefront step 0: layer-0(t=0) only (its recurrent term is exactly 0)
    hboth, cboth = cell(a_all[0:batch, :], cboth)
    lane = jax.lax.broadcasted_iota(jnp.int32, (batch, H2), 1)
    keep_l0 = lane < HIDDEN
    hboth = jnp.where(keep_l0, hboth, 0.0)   # discard spurious layer-1 half
    cboth = jnp.where(keep_l0, cboth, 0.0)

    h1_steps = []

    # --- wavefront steps s = 1..SEQ-1: layer-0(t=s) + layer-1(t=s-1), ONE dot.
    for s in range(1, seq):
        fused = jnp.dot(hboth, wf_ref[...], preferred_element_type=jnp.float32)
        gates = fused + a_all[s * batch:(s + 1) * batch, :]
        hboth, cboth = cell(gates, cboth)
        h1_steps.append(hboth[:, HIDDEN:H2])               # h1 at t = s-1

    # --- final wavefront step: layer-1(t=SEQ-1); layer-0 lanes are dead.
    fused = jnp.dot(hboth, wf_ref[...], preferred_element_type=jnp.float32)
    gates = fused + bias_ref[...]
    hboth, cboth = cell(gates, cboth)
    h1_steps.append(hboth[:, HIDDEN:H2])                   # h1 at t = SEQ-1

    # --- projection + sigmoid: broadcast-mul + lane reduce (no MXU), one store.
    h_all = jnp.concatenate(h1_steps, axis=0)              # (SEQ*BATCH, HIDDEN)
    logits = jnp.sum(h_all * wlin_ref[...], axis=-1, keepdims=True) + blin_ref[...]
    out_ref[...] = sig(logits)


# ----------------------------------------------------------------------------
# Wrapper
# ----------------------------------------------------------------------------
@jax.jit
def neural_network_forward(x, kparams):
    """x: (SEQ, BATCH, X_SIZE) f32 -> (SEQ, BATCH, 1) f32."""
    seq, batch, feat = x.shape
    xf = x.reshape(seq * batch, feat)        # layout plumbing outside the kernel

    args = (xf, kparams["wx"], kparams["wf"], kparams["bias"],
            kparams["wlin"], kparams["blin"])

    def full_spec(shape):
        n = len(shape)
        return pl.BlockSpec(shape, lambda i, n=n: (0,) * n)

    flat_out = pl.pallas_call(
        functools.partial(lstm_kernel, seq=seq),
        out_shape=jax.ShapeDtypeStruct((seq * batch, 1), jnp.float32),
        grid_spec=pltpu.PrefetchScalarGridSpec(
            num_scalar_prefetch=0,
            grid=(1,),                                   # whole recurrence in-kernel
            in_specs=[full_spec(a.shape) for a in args],
            out_specs=pl.BlockSpec((seq * batch, 1), lambda i: (0, 0)),
        ),
        compiler_params=pltpu.CompilerParams(
            dimension_semantics=("arbitrary",)),
    )(*args)

    return flat_out.reshape(seq, batch, 1)


# ----------------------------------------------------------------------------
# Parameters (raw torch layout) + kernel packing
# ----------------------------------------------------------------------------
def init_params(key):
    """Deterministic init with PyTorch LSTM/Linear shapes (gate order i,f,g,o)."""
    k = 1.0 / jnp.sqrt(jnp.float32(HIDDEN))
    keys = jax.random.split(key, 10)

    def u(kk, shape):
        return jax.random.uniform(kk, shape, jnp.float32, -k, k)

    return dict(
        w_ih0=u(keys[0], (4 * HIDDEN, X_SIZE)),
        w_hh0=u(keys[1], (4 * HIDDEN, HIDDEN)),
        b_ih0=u(keys[2], (4 * HIDDEN,)),
        b_hh0=u(keys[3], (4 * HIDDEN,)),
        w_ih1=u(keys[4], (4 * HIDDEN, HIDDEN)),
        w_hh1=u(keys[5], (4 * HIDDEN, HIDDEN)),
        b_ih1=u(keys[6], (4 * HIDDEN,)),
        b_hh1=u(keys[7], (4 * HIDDEN,)),
        w_lin=u(keys[8], (1, HIDDEN)),
        b_lin=u(keys[9], (1,)),
    )


def _interleave_gates(layer0_cols, layer1_cols):
    """(rows, 4H) [i|f|g|o] per layer -> (rows, 8H) [i0 i1 f0 f1 g0 g1 o0 o1]."""
    r = layer0_cols.shape[0]
    a = layer0_cols.reshape(r, 4, HIDDEN)
    b = layer1_cols.reshape(r, 4, HIDDEN)
    return jnp.stack([a, b], axis=2).reshape(r, 8 * HIDDEN)


def pack_kernel_params(p):
    """Pure glue, done once outside the kernel."""
    zeros_x = jnp.zeros((X_SIZE, 4 * HIDDEN), jnp.float32)
    zeros_h = jnp.zeros((HIDDEN, 4 * HIDDEN), jnp.float32)

    # Input projection (layer-0 only) with layer-1 columns zeroed.
    wx = _interleave_gates(p["w_ih0"].T, zeros_x)                     # (X_SIZE, 8H)
    # Folded biases of both layers.
    bias = _interleave_gates((p["b_ih0"] + p["b_hh0"]).reshape(1, 4 * HIDDEN),
                             (p["b_ih1"] + p["b_hh1"]).reshape(1, 4 * HIDDEN))
    # Fused recurrent weight: rows 0:H multiply h0, rows H:2H multiply h1.
    top = _interleave_gates(p["w_hh0"].T, p["w_ih1"].T)               # h0 rows
    bot = _interleave_gates(zeros_h, p["w_hh1"].T)                    # h1 rows
    wf = jnp.concatenate([top, bot], axis=0)                          # (2H, 8H)

    return dict(wx=wx, wf=wf, bias=bias,
                wlin=p["w_lin"],                                      # (1, H)
                blin=p["b_lin"].reshape(1, 1))


# ----------------------------------------------------------------------------
# Pure-JAX reference (torch.nn.LSTM semantics) + test
# ----------------------------------------------------------------------------
def reference_forward(x, p):
    def cell(x_t, h, c, w_ih, w_hh, b_ih, b_hh):
        gates = x_t @ w_ih.T + h @ w_hh.T + b_ih + b_hh
        i = jax.nn.sigmoid(gates[:, 0 * HIDDEN:1 * HIDDEN])
        f = jax.nn.sigmoid(gates[:, 1 * HIDDEN:2 * HIDDEN])
        g = jnp.tanh(gates[:, 2 * HIDDEN:3 * HIDDEN])
        o = jax.nn.sigmoid(gates[:, 3 * HIDDEN:4 * HIDDEN])
        c_new = f * c + i * g
        return o * jnp.tanh(c_new), c_new

    seq, batch, _ = x.shape
    z = jnp.zeros((batch, HIDDEN), jnp.float32)
    h0, c0, h1, c1 = z, z, z, z
    outs = []
    for t in range(seq):
        h0, c0 = cell(x[t], h0, c0, p["w_ih0"], p["w_hh0"], p["b_ih0"], p["b_hh0"])
        h1, c1 = cell(h0, h1, c1, p["w_ih1"], p["w_hh1"], p["b_ih1"], p["b_hh1"])
        outs.append(jax.nn.sigmoid(h1 @ p["w_lin"].T + p["b_lin"]))
    return jnp.stack(outs, axis=0)  # (SEQ, BATCH, 1)


if __name__ == "__main__":
    key = jax.random.PRNGKey(0)
    k_x, k_p = jax.random.split(key)
    x = jax.random.normal(k_x, (SEQ, BATCH, X_SIZE), jnp.float32)
    params = init_params(k_p)
    kparams = pack_kernel_params(params)

    out = neural_network_forward(x, kparams)
    out = jax.block_until_ready(out)

    ref = reference_forward(x, params)
    assert out.shape == (SEQ, BATCH, 1)
    assert jnp.allclose(out, ref, atol=1e-4, rtol=1e-4), \
        float(jnp.max(jnp.abs(out - ref)))
    print("KERNEL_OK")
</pallas_src>

<mosaic_0001>
module attributes {stable_mosaic.version = 11 : i64} {
  func.func @lstm_kernel(%arg0: i32, %arg1: memref<16x21xf32, #tpu.memory_space<vmem>>, %arg2: memref<21x256xf32, #tpu.memory_space<vmem>>, %arg3: memref<64x256xf32, #tpu.memory_space<vmem>>, %arg4: memref<1x256xf32, #tpu.memory_space<vmem>>, %arg5: memref<1x32xf32, #tpu.memory_space<vmem>>, %arg6: memref<1x1xf32, #tpu.memory_space<vmem>>, %arg7: memref<16x1xf32, #tpu.memory_space<vmem>>) attributes {dimension_semantics = [#tpu.dimension_semantics<arbitrary>], iteration_bounds = array<i64: 1>, scalar_prefetch = 0 : i64, scratch_operands = 0 : i64, tpu.core_type = #tpu.core_type<tc>, window_params = [{pipeline_mode = #tpu.pipeline_mode<synchronous>, transform_indices = @transform_0, window_bounds = array<i64: 16, 21>}, {pipeline_mode = #tpu.pipeline_mode<synchronous>, transform_indices = @transform_1, window_bounds = array<i64: 21, 256>}, {pipeline_mode = #tpu.pipeline_mode<synchronous>, transform_indices = @transform_2, window_bounds = array<i64: 64, 256>}, {pipeline_mode = #tpu.pipeline_mode<synchronous>, transform_indices = @transform_3, window_bounds = array<i64: 1, 256>}, {pipeline_mode = #tpu.pipeline_mode<synchronous>, transform_indices = @transform_4, window_bounds = array<i64: 1, 32>}, {pipeline_mode = #tpu.pipeline_mode<synchronous>, transform_indices = @transform_5, window_bounds = array<i64: 1, 1>}, {pipeline_mode = #tpu.pipeline_mode<synchronous>, transform_indices = @transform_6, window_bounds = array<i64: 16, 1>}]} {
    %c0 = arith.constant 0 : index
    %c0_0 = arith.constant 0 : index
    %0 = vector.load %arg1[%c0, %c0_0] : memref<16x21xf32, #tpu.memory_space<vmem>>, vector<16x21xf32>
    %c0_1 = arith.constant 0 : index
    %c0_2 = arith.constant 0 : index
    %1 = vector.load %arg2[%c0_1, %c0_2] : memref<21x256xf32, #tpu.memory_space<vmem>>, vector<21x256xf32>
    %cst = arith.constant dense<0.000000e+00> : vector<16x256xf32>
    %2 = tpu.matmul %0, %1, %cst {dimension_numbers = #tpu.dot_dimension_numbers<[1], [0], [0], [1], [0, 0, 1, 1], [], []>} : vector<16x21xf32>, vector<21x256xf32>, vector<16x256xf32> -> vector<16x256xf32>
    %c0_3 = arith.constant 0 : index
    %c0_4 = arith.constant 0 : index
    %3 = vector.load %arg4[%c0_3, %c0_4] : memref<1x256xf32, #tpu.memory_space<vmem>>, vector<1x256xf32>
    %4 = vector.broadcast %3 : vector<1x256xf32> to vector<16x256xf32>
    %5 = arith.addf %2, %4 : vector<16x256xf32>
    %cst_5 = arith.constant 0.000000e+00 : f32
    %6 = vector.broadcast %cst_5 : f32 to vector<2x64xf32>
    %7 = vector.extract_strided_slice %5 {offsets = [0, 0], sizes = [2, 256], strides = [1, 1]} : vector<16x256xf32> to vector<2x256xf32>
    %cst_6 = arith.constant 5.000000e-01 : f32
    %8 = vector.broadcast %cst_6 : f32 to vector<2x256xf32>
    %9 = arith.mulf %8, %7 : vector<2x256xf32>
    %10 = math.tanh %9 : vector<2x256xf32>
    %cst_7 = arith.constant 5.000000e-01 : f32
    %11 = vector.broadcast %cst_7 : f32 to vector<2x256xf32>
    %12 = arith.mulf %11, %10 : vector<2x256xf32>
    %cst_8 = arith.constant 5.000000e-01 : f32
    %13 = vector.broadcast %cst_8 : f32 to vector<2x256xf32>
    %14 = arith.addf %12, %13 : vector<2x256xf32>
    %15 = vector.extract_strided_slice %7 {offsets = [0, 128], sizes = [2, 64], strides = [1, 1]} : vector<2x256xf32> to vector<2x64xf32>
    %16 = math.tanh %15 : vector<2x64xf32>
    %17 = vector.extract_strided_slice %14 {offsets = [0, 0], sizes = [2, 64], strides = [1, 1]} : vector<2x256xf32> to vector<2x64xf32>
    %18 = vector.extract_strided_slice %14 {offsets = [0, 64], sizes = [2, 64], strides = [1, 1]} : vector<2x256xf32> to vector<2x64xf32>
    %19 = vector.extract_strided_slice %14 {offsets = [0, 192], sizes = [2, 64], strides = [1, 1]} : vector<2x256xf32> to vector<2x64xf32>
    %20 = arith.mulf %18, %6 : vector<2x64xf32>
    %21 = arith.mulf %17, %16 : vector<2x64xf32>
    %22 = arith.addf %20, %21 : vector<2x64xf32>
    %23 = math.tanh %22 : vector<2x64xf32>
    %24 = arith.mulf %19, %23 : vector<2x64xf32>
    %25 = tpu.iota {dimensions = array<i32: 1>} : vector<2x64xi32>
    %c32_i32 = arith.constant 32 : i32
    %26 = vector.broadcast %c32_i32 : i32 to vector<2x64xi32>
    %27 = arith.cmpi slt, %25, %26 : vector<2x64xi32>
    %cst_9 = arith.constant 0.000000e+00 : f32
    %28 = vector.broadcast %cst_9 : f32 to vector<2x64xf32>
    %29 = arith.select %27, %24, %28 : vector<2x64xi1>, vector<2x64xf32>
    %cst_10 = arith.constant 0.000000e+00 : f32
    %30 = vector.broadcast %cst_10 : f32 to vector<2x64xf32>
    %31 = arith.select %27, %22, %30 : vector<2x64xi1>, vector<2x64xf32>
    %c0_11 = arith.constant 0 : index
    %c0_12 = arith.constant 0 : index
    %32 = vector.load %arg3[%c0_11, %c0_12] : memref<64x256xf32, #tpu.memory_space<vmem>>, vector<64x256xf32>
    %cst_13 = arith.constant dense<0.000000e+00> : vector<2x256xf32>
    %33 = tpu.matmul %29, %32, %cst_13 {dimension_numbers = #tpu.dot_dimension_numbers<[1], [0], [0], [1], [0, 0, 1, 1], [], []>} : vector<2x64xf32>, vector<64x256xf32>, vector<2x256xf32> -> vector<2x256xf32>
    %34 = vector.extract_strided_slice %5 {offsets = [2, 0], sizes = [2, 256], strides = [1, 1]} : vector<16x256xf32> to vector<2x256xf32>
    %35 = arith.addf %33, %34 : vector<2x256xf32>
    %cst_14 = arith.constant 5.000000e-01 : f32
    %36 = vector.broadcast %cst_14 : f32 to vector<2x256xf32>
    %37 = arith.mulf %36, %35 : vector<2x256xf32>
    %38 = math.tanh %37 : vector<2x256xf32>
    %cst_15 = arith.constant 5.000000e-01 : f32
    %39 = vector.broadcast %cst_15 : f32 to vector<2x256xf32>
    %40 = arith.mulf %39, %38 : vector<2x256xf32>
    %cst_16 = arith.constant 5.000000e-01 : f32
    %41 = vector.broadcast %cst_16 : f32 to vector<2x256xf32>
    %42 = arith.addf %40, %41 : vector<2x256xf32>
    %43 = vector.extract_strided_slice %35 {offsets = [0, 128], sizes = [2, 64], strides = [1, 1]} : vector<2x256xf32> to vector<2x64xf32>
    %44 = math.tanh %43 : vector<2x64xf32>
    %45 = vector.extract_strided_slice %42 {offsets = [0, 0], sizes = [2, 64], strides = [1, 1]} : vector<2x256xf32> to vector<2x64xf32>
    %46 = vector.extract_strided_slice %42 {offsets = [0, 64], sizes = [2, 64], strides = [1, 1]} : vector<2x256xf32> to vector<2x64xf32>
    %47 = vector.extract_strided_slice %42 {offsets = [0, 192], sizes = [2, 64], strides = [1, 1]} : vector<2x256xf32> to vector<2x64xf32>
    %48 = arith.mulf %46, %31 : vector<2x64xf32>
    %49 = arith.mulf %45, %44 : vector<2x64xf32>
    %50 = arith.addf %48, %49 : vector<2x64xf32>
    %51 = math.tanh %50 : vector<2x64xf32>
    %52 = arith.mulf %47, %51 : vector<2x64xf32>
    %53 = vector.extract_strided_slice %52 {offsets = [0, 32], sizes = [2, 32], strides = [1, 1]} : vector<2x64xf32> to vector<2x32xf32>
    %c0_17 = arith.constant 0 : index
    %c0_18 = arith.constant 0 : index
    %54 = vector.load %arg3[%c0_17, %c0_18] : memref<64x256xf32, #tpu.memory_space<vmem>>, vector<64x256xf32>
    %cst_19 = arith.constant dense<0.000000e+00> : vector<2x256xf32>
    %55 = tpu.matmul %52, %54, %cst_19 {dimension_numbers = #tpu.dot_dimension_numbers<[1], [0], [0], [1], [0, 0, 1, 1], [], []>} : vector<2x64xf32>, vector<64x256xf32>, vector<2x256xf32> -> vector<2x256xf32>
    %56 = vector.extract_strided_slice %5 {offsets = [4, 0], sizes = [2, 256], strides = [1, 1]} : vector<16x256xf32> to vector<2x256xf32>
    %57 = arith.addf %55, %56 : vector<2x256xf32>
    %cst_20 = arith.constant 5.000000e-01 : f32
    %58 = vector.broadcast %cst_20 : f32 to vector<2x256xf32>
    %59 = arith.mulf %58, %57 : vector<2x256xf32>
    %60 = math.tanh %59 : vector<2x256xf32>
    %cst_21 = arith.constant 5.000000e-01 : f32
    %61 = vector.broadcast %cst_21 : f32 to vector<2x256xf32>
    %62 = arith.mulf %61, %60 : vector<2x256xf32>
    %cst_22 = arith.constant 5.000000e-01 : f32
    %63 = vector.broadcast %cst_22 : f32 to vector<2x256xf32>
    %64 = arith.addf %62, %63 : vector<2x256xf32>
    %65 = vector.extract_strided_slice %57 {offsets = [0, 128], sizes = [2, 64], strides = [1, 1]} : vector<2x256xf32> to vector<2x64xf32>
    %66 = math.tanh %65 : vector<2x64xf32>
    %67 = vector.extract_strided_slice %64 {offsets = [0, 0], sizes = [2, 64], strides = [1, 1]} : vector<2x256xf32> to vector<2x64xf32>
    %68 = vector.extract_strided_slice %64 {offsets = [0, 64], sizes = [2, 64], strides = [1, 1]} : vector<2x256xf32> to vector<2x64xf32>
    %69 = vector.extract_strided_slice %64 {offsets = [0, 192], sizes = [2, 64], strides = [1, 1]} : vector<2x256xf32> to vector<2x64xf32>
    %70 = arith.mulf %68, %50 : vector<2x64xf32>
    %71 = arith.mulf %67, %66 : vector<2x64xf32>
    %72 = arith.addf %70, %71 : vector<2x64xf32>
    %73 = math.tanh %72 : vector<2x64xf32>
    %74 = arith.mulf %69, %73 : vector<2x64xf32>
    %75 = vector.extract_strided_slice %74 {offsets = [0, 32], sizes = [2, 32], strides = [1, 1]} : vector<2x64xf32> to vector<2x32xf32>
    %c0_23 = arith.constant 0 : index
    %c0_24 = arith.constant 0 : index
    %76 = vector.load %arg3[%c0_23, %c0_24] : memref<64x256xf32, #tpu.memory_space<vmem>>, vector<64x256xf32>
    %cst_25 = arith.constant dense<0.000000e+00> : vector<2x256xf32>
    %77 = tpu.matmul %74, %76, %cst_25 {dimension_numbers = #tpu.dot_dimension_numbers<[1], [0], [0], [1], [0, 0, 1, 1], [], []>} : vector<2x64xf32>, vector<64x256xf32>, vector<2x256xf32> -> vector<2x256xf32>
    %78 = vector.extract_strided_slice %5 {offsets = [6, 0], sizes = [2, 256], strides = [1, 1]} : vector<16x256xf32> to vector<2x256xf32>
    %79 = arith.addf %77, %78 : vector<2x256xf32>
    %cst_26 = arith.constant 5.000000e-01 : f32
    %80 = vector.broadcast %cst_26 : f32 to vector<2x256xf32>
    %81 = arith.mulf %80, %79 : vector<2x256xf32>
    %82 = math.tanh %81 : vector<2x256xf32>
    %cst_27 = arith.constant 5.000000e-01 : f32
    %83 = vector.broadcast %cst_27 : f32 to vector<2x256xf32>
    %84 = arith.mulf %83, %82 : vector<2x256xf32>
    %cst_28 = arith.constant 5.000000e-01 : f32
    %85 = vector.broadcast %cst_28 : f32 to vector<2x256xf32>
    %86 = arith.addf %84, %85 : vector<2x256xf32>
    %87 = vector.extract_strided_slice %79 {offsets = [0, 128], sizes = [2, 64], strides = [1, 1]} : vector<2x256xf32> to vector<2x64xf32>
    %88 = math.tanh %87 : vector<2x64xf32>
    %89 = vector.extract_strided_slice %86 {offsets = [0, 0], sizes = [2, 64], strides = [1, 1]} : vector<2x256xf32> to vector<2x64xf32>
    %90 = vector.extract_strided_slice %86 {offsets = [0, 64], sizes = [2, 64], strides = [1, 1]} : vector<2x256xf32> to vector<2x64xf32>
    %91 = vector.extract_strided_slice %86 {offsets = [0, 192], sizes = [2, 64], strides = [1, 1]} : vector<2x256xf32> to vector<2x64xf32>
    %92 = arith.mulf %90, %72 : vector<2x64xf32>
    %93 = arith.mulf %89, %88 : vector<2x64xf32>
    %94 = arith.addf %92, %93 : vector<2x64xf32>
    %95 = math.tanh %94 : vector<2x64xf32>
    %96 = arith.mulf %91, %95 : vector<2x64xf32>
    %97 = vector.extract_strided_slice %96 {offsets = [0, 32], sizes = [2, 32], strides = [1, 1]} : vector<2x64xf32> to vector<2x32xf32>
    %c0_29 = arith.constant 0 : index
    %c0_30 = arith.constant 0 : index
    %98 = vector.load %arg3[%c0_29, %c0_30] : memref<64x256xf32, #tpu.memory_space<vmem>>, vector<64x256xf32>
    %cst_31 = arith.constant dense<0.000000e+00> : vector<2x256xf32>
    %99 = tpu.matmul %96, %98, %cst_31 {dimension_numbers = #tpu.dot_dimension_numbers<[1], [0], [0], [1], [0, 0, 1, 1], [], []>} : vector<2x64xf32>, vector<64x256xf32>, vector<2x256xf32> -> vector<2x256xf32>
    %100 = vector.extract_strided_slice %5 {offsets = [8, 0], sizes = [2, 256], strides = [1, 1]} : vector<16x256xf32> to vector<2x256xf32>
    %101 = arith.addf %99, %100 : vector<2x256xf32>
    %cst_32 = arith.constant 5.000000e-01 : f32
    %102 = vector.broadcast %cst_32 : f32 to vector<2x256xf32>
    %103 = arith.mulf %102, %101 : vector<2x256xf32>
    %104 = math.tanh %103 : vector<2x256xf32>
    %cst_33 = arith.constant 5.000000e-01 : f32
    %105 = vector.broadcast %cst_33 : f32 to vector<2x256xf32>
    %106 = arith.mulf %105, %104 : vector<2x256xf32>
    %cst_34 = arith.constant 5.000000e-01 : f32
    %107 = vector.broadcast %cst_34 : f32 to vector<2x256xf32>
    %108 = arith.addf %106, %107 : vector<2x256xf32>
    %109 = vector.extract_strided_slice %101 {offsets = [0, 128], sizes = [2, 64], strides = [1, 1]} : vector<2x256xf32> to vector<2x64xf32>
    %110 = math.tanh %109 : vector<2x64xf32>
    %111 = vector.extract_strided_slice %108 {offsets = [0, 0], sizes = [2, 64], strides = [1, 1]} : vector<2x256xf32> to vector<2x64xf32>
    %112 = vector.extract_strided_slice %108 {offsets = [0, 64], sizes = [2, 64], strides = [1, 1]} : vector<2x256xf32> to vector<2x64xf32>
    %113 = vector.extract_strided_slice %108 {offsets = [0, 192], sizes = [2, 64], strides = [1, 1]} : vector<2x256xf32> to vector<2x64xf32>
    %114 = arith.mulf %112, %94 : vector<2x64xf32>
    %115 = arith.mulf %111, %110 : vector<2x64xf32>
    %116 = arith.addf %114, %115 : vector<2x64xf32>
    %117 = math.tanh %116 : vector<2x64xf32>
    %118 = arith.mulf %113, %117 : vector<2x64xf32>
    %119 = vector.extract_strided_slice %118 {offsets = [0, 32], sizes = [2, 32], strides = [1, 1]} : vector<2x64xf32> to vector<2x32xf32>
    %c0_35 = arith.constant 0 : index
    %c0_36 = arith.constant 0 : index
    %120 = vector.load %arg3[%c0_35, %c0_36] : memref<64x256xf32, #tpu.memory_space<vmem>>, vector<64x256xf32>
    %cst_37 = arith.constant dense<0.000000e+00> : vector<2x256xf32>
    %121 = tpu.matmul %118, %120, %cst_37 {dimension_numbers = #tpu.dot_dimension_numbers<[1], [0], [0], [1], [0, 0, 1, 1], [], []>} : vector<2x64xf32>, vector<64x256xf32>, vector<2x256xf32> -> vector<2x256xf32>
    %122 = vector.extract_strided_slice %5 {offsets = [10, 0], sizes = [2, 256], strides = [1, 1]} : vector<16x256xf32> to vector<2x256xf32>
    %123 = arith.addf %121, %122 : vector<2x256xf32>
    %cst_38 = arith.constant 5.000000e-01 : f32
    %124 = vector.broadcast %cst_38 : f32 to vector<2x256xf32>
    %125 = arith.mulf %124, %123 : vector<2x256xf32>
    %126 = math.tanh %125 : vector<2x256xf32>
    %cst_39 = arith.constant 5.000000e-01 : f32
    %127 = vector.broadcast %cst_39 : f32 to vector<2x256xf32>
    %128 = arith.mulf %127, %126 : vector<2x256xf32>
    %cst_40 = arith.constant 5.000000e-01 : f32
    %129 = vector.broadcast %cst_40 : f32 to vector<2x256xf32>
    %130 = arith.addf %128, %129 : vector<2x256xf32>
    %131 = vector.extract_strided_slice %123 {offsets = [0, 128], sizes = [2, 64], strides = [1, 1]} : vector<2x256xf32> to vector<2x64xf32>
    %132 = math.tanh %131 : vector<2x64xf32>
    %133 = vector.extract_strided_slice %130 {offsets = [0, 0], sizes = [2, 64], strides = [1, 1]} : vector<2x256xf32> to vector<2x64xf32>
    %134 = vector.extract_strided_slice %130 {offsets = [0, 64], sizes = [2, 64], strides = [1, 1]} : vector<2x256xf32> to vector<2x64xf32>
    %135 = vector.extract_strided_slice %130 {offsets = [0, 192], sizes = [2, 64], strides = [1, 1]} : vector<2x256xf32> to vector<2x64xf32>
    %136 = arith.mulf %134, %116 : vector<2x64xf32>
    %137 = arith.mulf %133, %132 : vector<2x64xf32>
    %138 = arith.addf %136, %137 : vector<2x64xf32>
    %139 = math.tanh %138 : vector<2x64xf32>
    %140 = arith.mulf %135, %139 : vector<2x64xf32>
    %141 = vector.extract_strided_slice %140 {offsets = [0, 32], sizes = [2, 32], strides = [1, 1]} : vector<2x64xf32> to vector<2x32xf32>
    %c0_41 = arith.constant 0 : index
    %c0_42 = arith.constant 0 : index
    %142 = vector.load %arg3[%c0_41, %c0_42] : memref<64x256xf32, #tpu.memory_space<vmem>>, vector<64x256xf32>
    %cst_43 = arith.constant dense<0.000000e+00> : vector<2x256xf32>
    %143 = tpu.matmul %140, %142, %cst_43 {dimension_numbers = #tpu.dot_dimension_numbers<[1], [0], [0], [1], [0, 0, 1, 1], [], []>} : vector<2x64xf32>, vector<64x256xf32>, vector<2x256xf32> -> vector<2x256xf32>
    %144 = vector.extract_strided_slice %5 {offsets = [12, 0], sizes = [2, 256], strides = [1, 1]} : vector<16x256xf32> to vector<2x256xf32>
    %145 = arith.addf %143, %144 : vector<2x256xf32>
    %cst_44 = arith.constant 5.000000e-01 : f32
    %146 = vector.broadcast %cst_44 : f32 to vector<2x256xf32>
    %147 = arith.mulf %146, %145 : vector<2x256xf32>
    %148 = math.tanh %147 : vector<2x256xf32>
    %cst_45 = arith.constant 5.000000e-01 : f32
    %149 = vector.broadcast %cst_45 : f32 to vector<2x256xf32>
    %150 = arith.mulf %149, %148 : vector<2x256xf32>
    %cst_46 = arith.constant 5.000000e-01 : f32
    %151 = vector.broadcast %cst_46 : f32 to vector<2x256xf32>
    %152 = arith.addf %150, %151 : vector<2x256xf32>
    %153 = vector.extract_strided_slice %145 {offsets = [0, 128], sizes = [2, 64], strides = [1, 1]} : vector<2x256xf32> to vector<2x64xf32>
    %154 = math.tanh %153 : vector<2x64xf32>
    %155 = vector.extract_strided_slice %152 {offsets = [0, 0], sizes = [2, 64], strides = [1, 1]} : vector<2x256xf32> to vector<2x64xf32>
    %156 = vector.extract_strided_slice %152 {offsets = [0, 64], sizes = [2, 64], strides = [1, 1]} : vector<2x256xf32> to vector<2x64xf32>
    %157 = vector.extract_strided_slice %152 {offsets = [0, 192], sizes = [2, 64], strides = [1, 1]} : vector<2x256xf32> to vector<2x64xf32>
    %158 = arith.mulf %156, %138 : vector<2x64xf32>
    %159 = arith.mulf %155, %154 : vector<2x64xf32>
    %160 = arith.addf %158, %159 : vector<2x64xf32>
    %161 = math.tanh %160 : vector<2x64xf32>
    %162 = arith.mulf %157, %161 : vector<2x64xf32>
    %163 = vector.extract_strided_slice %162 {offsets = [0, 32], sizes = [2, 32], strides = [1, 1]} : vector<2x64xf32> to vector<2x32xf32>
    %c0_47 = arith.constant 0 : index
    %c0_48 = arith.constant 0 : index
    %164 = vector.load %arg3[%c0_47, %c0_48] : memref<64x256xf32, #tpu.memory_space<vmem>>, vector<64x256xf32>
    %cst_49 = arith.constant dense<0.000000e+00> : vector<2x256xf32>
    %165 = tpu.matmul %162, %164, %cst_49 {dimension_numbers = #tpu.dot_dimension_numbers<[1], [0], [0], [1], [0, 0, 1, 1], [], []>} : vector<2x64xf32>, vector<64x256xf32>, vector<2x256xf32> -> vector<2x256xf32>
    %166 = vector.extract_strided_slice %5 {offsets = [14, 0], sizes = [2, 256], strides = [1, 1]} : vector<16x256xf32> to vector<2x256xf32>
    %167 = arith.addf %165, %166 : vector<2x256xf32>
    %cst_50 = arith.constant 5.000000e-01 : f32
    %168 = vector.broadcast %cst_50 : f32 to vector<2x256xf32>
    %169 = arith.mulf %168, %167 : vector<2x256xf32>
    %170 = math.tanh %169 : vector<2x256xf32>
    %cst_51 = arith.constant 5.000000e-01 : f32
    %171 = vector.broadcast %cst_51 : f32 to vector<2x256xf32>
    %172 = arith.mulf %171, %170 : vector<2x256xf32>
    %cst_52 = arith.constant 5.000000e-01 : f32
    %173 = vector.broadcast %cst_52 : f32 to vector<2x256xf32>
    %174 = arith.addf %172, %173 : vector<2x256xf32>
    %175 = vector.extract_strided_slice %167 {offsets = [0, 128], sizes = [2, 64], strides = [1, 1]} : vector<2x256xf32> to vector<2x64xf32>
    %176 = math.tanh %175 : vector<2x64xf32>
    %177 = vector.extract_strided_slice %174 {offsets = [0, 0], sizes = [2, 64], strides = [1, 1]} : vector<2x256xf32> to vector<2x64xf32>
    %178 = vector.extract_strided_slice %174 {offsets = [0, 64], sizes = [2, 64], strides = [1, 1]} : vector<2x256xf32> to vector<2x64xf32>
    %179 = vector.extract_strided_slice %174 {offsets = [0, 192], sizes = [2, 64], strides = [1, 1]} : vector<2x256xf32> to vector<2x64xf32>
    %180 = arith.mulf %178, %160 : vector<2x64xf32>
    %181 = arith.mulf %177, %176 : vector<2x64xf32>
    %182 = arith.addf %180, %181 : vector<2x64xf32>
    %183 = math.tanh %182 : vector<2x64xf32>
    %184 = arith.mulf %179, %183 : vector<2x64xf32>
    %185 = vector.extract_strided_slice %184 {offsets = [0, 32], sizes = [2, 32], strides = [1, 1]} : vector<2x64xf32> to vector<2x32xf32>
    %c0_53 = arith.constant 0 : index
    %c0_54 = arith.constant 0 : index
    %186 = vector.load %arg3[%c0_53, %c0_54] : memref<64x256xf32, #tpu.memory_space<vmem>>, vector<64x256xf32>
    %cst_55 = arith.constant dense<0.000000e+00> : vector<2x256xf32>
    %187 = tpu.matmul %184, %186, %cst_55 {dimension_numbers = #tpu.dot_dimension_numbers<[1], [0], [0], [1], [0, 0, 1, 1], [], []>} : vector<2x64xf32>, vector<64x256xf32>, vector<2x256xf32> -> vector<2x256xf32>
    %c0_56 = arith.constant 0 : index
    %c0_57 = arith.constant 0 : index
    %188 = vector.load %arg4[%c0_56, %c0_57] : memref<1x256xf32, #tpu.memory_space<vmem>>, vector<1x256xf32>
    %189 = vector.broadcast %188 : vector<1x256xf32> to vector<2x256xf32>
    %190 = arith.addf %187, %189 : vector<2x256xf32>
    %cst_58 = arith.constant 5.000000e-01 : f32
    %191 = vector.broadcast %cst_58 : f32 to vector<2x256xf32>
    %192 = arith.mulf %191, %190 : vector<2x256xf32>
    %193 = math.tanh %192 : vector<2x256xf32>
    %cst_59 = arith.constant 5.000000e-01 : f32
    %194 = vector.broadcast %cst_59 : f32 to vector<2x256xf32>
    %195 = arith.mulf %194, %193 : vector<2x256xf32>
    %cst_60 = arith.constant 5.000000e-01 : f32
    %196 = vector.broadcast %cst_60 : f32 to vector<2x256xf32>
    %197 = arith.addf %195, %196 : vector<2x256xf32>
    %198 = vector.extract_strided_slice %190 {offsets = [0, 128], sizes = [2, 64], strides = [1, 1]} : vector<2x256xf32> to vector<2x64xf32>
    %199 = math.tanh %198 : vector<2x64xf32>
    %200 = vector.extract_strided_slice %197 {offsets = [0, 0], sizes = [2, 64], strides = [1, 1]} : vector<2x256xf32> to vector<2x64xf32>
    %201 = vector.extract_strided_slice %197 {offsets = [0, 64], sizes = [2, 64], strides = [1, 1]} : vector<2x256xf32> to vector<2x64xf32>
    %202 = vector.extract_strided_slice %197 {offsets = [0, 192], sizes = [2, 64], strides = [1, 1]} : vector<2x256xf32> to vector<2x64xf32>
    %203 = arith.mulf %201, %182 : vector<2x64xf32>
    %204 = arith.mulf %200, %199 : vector<2x64xf32>
    %205 = arith.addf %203, %204 : vector<2x64xf32>
    %206 = math.tanh %205 : vector<2x64xf32>
    %207 = arith.mulf %202, %206 : vector<2x64xf32>
    %208 = vector.extract_strided_slice %207 {offsets = [0, 32], sizes = [2, 32], strides = [1, 1]} : vector<2x64xf32> to vector<2x32xf32>
    %209 = tpu.concatenate %53, %75, %97, %119, %141, %163, %185, %208 in 0 : vector<2x32xf32>, vector<2x32xf32>, vector<2x32xf32>, vector<2x32xf32>, vector<2x32xf32>, vector<2x32xf32>, vector<2x32xf32>, vector<2x32xf32> -> vector<16x32xf32>
    %c0_61 = arith.constant 0 : index
    %c0_62 = arith.constant 0 : index
    %210 = vector.load %arg5[%c0_61, %c0_62] : memref<1x32xf32, #tpu.memory_space<vmem>>, vector<1x32xf32>
    %211 = vector.broadcast %210 : vector<1x32xf32> to vector<16x32xf32>
    %212 = arith.mulf %209, %211 : vector<16x32xf32>
    %cst_63 = arith.constant dense<0.000000e+00> : vector<16xf32>
    %213 = vector.multi_reduction <add>, %212, %cst_63 [1] : vector<16x32xf32> to vector<16xf32>
    %214 = vector.shape_cast %213 : vector<16xf32> to vector<16x1xf32>
    %c0_64 = arith.constant 0 : index
    %c0_65 = arith.constant 0 : index
    %215 = vector.load %arg6[%c0_64, %c0_65] : memref<1x1xf32, #tpu.memory_space<vmem>>, vector<1x1xf32>
    %216 = vector.broadcast %215 : vector<1x1xf32> to vector<16x1xf32>
    %217 = arith.addf %214, %216 : vector<16x1xf32>
    %cst_66 = arith.constant 5.000000e-01 : f32
    %218 = vector.broadcast %cst_66 : f32 to vector<16x1xf32>
    %219 = arith.mulf %218, %217 : vector<16x1xf32>
    %220 = math.tanh %219 : vector<16x1xf32>
    %cst_67 = arith.constant 5.000000e-01 : f32
    %221 = vector.broadcast %cst_67 : f32 to vector<16x1xf32>
    %222 = arith.mulf %221, %220 : vector<16x1xf32>
    %cst_68 = arith.constant 5.000000e-01 : f32
    %223 = vector.broadcast %cst_68 : f32 to vector<16x1xf32>
    %224 = arith.addf %222, %223 : vector<16x1xf32>
    %c0_69 = arith.constant 0 : index
    %c0_70 = arith.constant 0 : index
    %225 = vector.load %arg7[%c0_69, %c0_70] : memref<16x1xf32, #tpu.memory_space<vmem>>, vector<16x1xf32>
    tpu.vector_store %arg7[%c0_69, %c0_70], %224 {strides = array<i32>} : memref<16x1xf32, #tpu.memory_space<vmem>>, vector<16x1xf32>,
    return
  }
  func.func @transform_0(%arg0: i32) -> (i32, i32) {
    %c0_i32 = arith.constant 0 : i32
    %c0_i32_0 = arith.constant 0 : i32
    %c0_i32_1 = arith.constant 0 : i32
    return %c0_i32, %c0_i32_0 : i32, i32
  }
  func.func @transform_1(%arg0: i32) -> (i32, i32) {
    %c0_i32 = arith.constant 0 : i32
    %c0_i32_0 = arith.constant 0 : i32
    %c0_i32_1 = arith.constant 0 : i32
    return %c0_i32, %c0_i32_0 : i32, i32
  }
  func.func @transform_2(%arg0: i32) -> (i32, i32) {
    %c0_i32 = arith.constant 0 : i32
    %c0_i32_0 = arith.constant 0 : i32
    %c0_i32_1 = arith.constant 0 : i32
    return %c0_i32, %c0_i32_0 : i32, i32
  }
  func.func @transform_3(%arg0: i32) -> (i32, i32) {
    %c0_i32 = arith.constant 0 : i32
    %c0_i32_0 = arith.constant 0 : i32
    %c0_i32_1 = arith.constant 0 : i32
    return %c0_i32, %c0_i32_0 : i32, i32
  }
  func.func @transform_4(%arg0: i32) -> (i32, i32) {
    %c0_i32 = arith.constant 0 : i32
    %c0_i32_0 = arith.constant 0 : i32
    %c0_i32_1 = arith.constant 0 : i32
    return %c0_i32, %c0_i32_0 : i32, i32
  }
  func.func @transform_5(%arg0: i32) -> (i32, i32) {
    %c0_i32 = arith.constant 0 : i32
    %c0_i32_0 = arith.constant 0 : i32
    %c0_i32_1 = arith.constant 0 : i32
    return %c0_i32, %c0_i32_0 : i32, i32
  }
  func.func @transform_6(%arg0: i32) -> (i32, i32) {
    %c0_i32 = arith.constant 0 : i32
    %c0_i32_0 = arith.constant 0 : i32
    %c0_i32_1 = arith.constant 0 : i32
    return %c0_i32, %c0_i32_0 : i32, i32
  }
}

</mosaic_0001>

<llo_original>
// kernel: neural_network_forward.1
$region0: #{neural_network_forward.1}
  #allocation0 [shape = 'u32[]', space=smem, size = 0x4, offset = 0x4, fixed_abs, tag = 'smem constant byte address 0x4 - core index']
  #allocation1 [shape = 'u32[144,128]{1,0:T(1,128)}', space=vmem, size = 0x12000, scoped, tag = 'internal scratch']
  #allocation2 [shape = 'f32[1,1]{1,0:T(1,128)S(1)}', space=vmem, size = 0x200, scoped, tag = 'scoped memory for neural_network_forward.1']
  %s0 = inlined_call_operand.hbm [shape: f32[16,21], index: 0, kind: input, shape index: {}]
  %s1 = inlined_call_operand.hbm [shape: f32[21,256], index: 1, kind: input, shape index: {}]
  %s2 = inlined_call_operand.hbm [shape: f32[64,256], index: 2, kind: input, shape index: {}]
  %s3 = inlined_call_operand.vmem [shape: f32[1,256], index: 3, kind: input, shape index: {}]
  %s4 = inlined_call_operand.vmem [shape: f32[1,32], index: 4, kind: input, shape index: {}]
  %s5 = inlined_call_operand.<no memory space> [shape: f32[1,1], index: 5, kind: input, shape index: {}]
  %s6 = inlined_call_operand.vmem [shape: f32[16,1], index: 6, kind: output, shape index: {}]
  %s7 = sld [smem:[#allocation0]]
  $region46: #{neural_network_forward.1} parent=0
    _
  %s9 = ssub.s32 1, %s7
  %s10 = scalar_select 0, %s9, %s7
  %v11 = vstv %s5
  %12 = vst [vmem:[#allocation2] sm:$0x1] %v11
  $region1: #{neural_network_forward.1} parent=0
    #allocation3 [shape = 'u8[8192]{0}', space=vmem, size = 0x2000, scoped, tag = 'input window, operand 0, single buffered']
    #allocation4 [shape = 's32[1]{0}', space=sflag, size = 0x4, scoped, tag = 'scoped memory for neural_network_forward.1']
    #allocation5 [shape = 'u8[24576]{0}', space=vmem, size = 0x6000, scoped, tag = 'input window, operand 1, single buffered']
    #allocation6 [shape = 's32[1]{0}', space=sflag, size = 0x4, scoped, tag = 'scoped memory for neural_network_forward.1']
    #allocation7 [shape = 'u8[65536]{0}', space=vmem, size = 0x10000, scoped, tag = 'input window, operand 2, single buffered']
    %13 = vsyncpa [#allocation4], 0
    %14 = vsyncpa [#allocation6], 0
    // Predicated region
    $region2: #{neural_network_forward.1} parent=1 // pred_check
      _
    $region3: #{neural_network_forward.1} parent=1 // pred_check_branch
      %16 = sbr.rel (0) target = $region5
    $region4: #{neural_network_forward.1} parent=1 // pred_region
      %s18 = ssub.s32 256, 256
      %19 = vsyncadd [#allocation4], %s18
      %s20 = sshll.u32 [#allocation3], 4
      %s21 = int_to_ptr.vmem [resolvable:$true] %s20
      %26 = dma.hbm_to_vmem [thread:$0]  %s0, 256, %s21, [#allocation4], 128, 128, 8
    $region5: #{neural_network_forward.1} parent=1 // pred_fallthru
      _
    // Predicated region
    $region6: #{neural_network_forward.1} parent=1 // pred_check
      _
    $region7: #{neural_network_forward.1} parent=1 // pred_check_branch
      %28 = sbr.rel (0) target = $region9
    $region8: #{neural_network_forward.1} parent=1 // pred_region
      %s30 = ssub.s32 768, 768
      %31 = vsyncadd [#allocation6], %s30
      %s32 = sshll.u32 [#allocation5], 4
      %s33 = int_to_ptr.vmem [resolvable:$true] %s32
      %38 = dma.hbm_to_vmem [thread:$0]  %s1, 768, %s33, [#allocation6], 256, 256, 16
    $region9: #{neural_network_forward.1} parent=1 // pred_fallthru
      _
    // Predicated region
    $region10: #{neural_network_forward.1} parent=1 // pred_check
      _
    $region11: #{neural_network_forward.1} parent=1 // pred_check_branch
      %40 = sbr.rel (0) target = $region13
    $region12: #{neural_network_forward.1} parent=1 // pred_region
      %s42 = ssub.s32 2048, 2048
      %43 = vsyncadd [#allocation6], %s42
      %s44 = sshll.u32 [#allocation7], 4
      %s45 = int_to_ptr.vmem [resolvable:$true] %s44
      %50 = dma.hbm_to_vmem [thread:$0]  %s2, 2048, %s45, [#allocation6], 256, 256, 16
    $region13: #{neural_network_forward.1} parent=1 // pred_fallthru
      _
    // Predicated region
    $region14: #{neural_network_forward.1} parent=1 // pred_check
      _
    $region15: #{neural_network_forward.1} parent=1 // pred_check_branch
      %52 = sbr.rel (0) target = $region17
    $region16: #{neural_network_forward.1} parent=1 // pred_region
      _
    $region17: #{neural_network_forward.1} parent=1 // pred_fallthru
      _
    // Predicated region
    $region18: #{neural_network_forward.1} parent=1 // pred_check
      _
    $region19: #{neural_network_forward.1} parent=1 // pred_check_branch
      %54 = sbr.rel (0) target = $region21
    $region20: #{neural_network_forward.1} parent=1 // pred_region
      _
    $region21: #{neural_network_forward.1} parent=1 // pred_fallthru
      _
    // Predicated region
    $region22: #{neural_network_forward.1} parent=1 // pred_check
      _
    $region23: #{neural_network_forward.1} parent=1 // pred_check_branch
      %56 = sbr.rel (0) target = $region25
    $region24: #{neural_network_forward.1} parent=1 // pred_region
      _
    $region25: #{neural_network_forward.1} parent=1 // pred_fallthru
      _
    // Predicated region
    $region26: #{neural_network_forward.1} parent=1 // pred_check
      _
    $region27: #{neural_network_forward.1} parent=1 // pred_check_branch
      %58 = sbr.rel (0) target = $region29
    $region28: #{neural_network_forward.1} parent=1 // pred_region
      %59 = dma.done [#allocation4], 256
    $region29: #{neural_network_forward.1} parent=1 // pred_fallthru
      _
    // Predicated region
    $region30: #{neural_network_forward.1} parent=1 // pred_check
      _
    $region31: #{neural_network_forward.1} parent=1 // pred_check_branch
      %61 = sbr.rel (0) target = $region33
    $region32: #{neural_network_forward.1} parent=1 // pred_region
      %62 = dma.done [#allocation6], 768
    $region33: #{neural_network_forward.1} parent=1 // pred_fallthru
      _
    // Predicated region
    $region34: #{neural_network_forward.1} parent=1 // pred_check
      _
    $region35: #{neural_network_forward.1} parent=1 // pred_check_branch
      %64 = sbr.rel (0) target = $region37
    $region36: #{neural_network_forward.1} parent=1 // pred_region
      %65 = dma.done [#allocation6], 2048
    $region37: #{neural_network_forward.1} parent=1 // pred_fallthru
      _
    %v66 = vld [vmem:[#allocation3] sm:$0xff]
    %v67 = vld [vmem:[#allocation3 + $0x8] sm:$0xff]
    %v68 = vld [vmem:[#allocation5] sm:$0xff]
    %v69 = vld [vmem:[#allocation5 + $0x8] sm:$0xff]
    %v70 = vld [vmem:[#allocation5 + $0x10] sm:$0xff]
    %v71 = vld [vmem:[#allocation5 + $0x18] sm:$0xff]
    %v72 = vld [vmem:[#allocation5 + $0x20] sm:$0x1f]
    %v73 = vld [vmem:[#allocation5 + $0x28] sm:$0x1f]
    %v74 = vld [vmem:[%s3] sm:$0x3]
    %v76 = vlaneseq
    %v77 = vshrl.u32 %v76, 7
    %v78 = vsub.s32 0, %v77
    %v79 = vrot.slane %v74, %v78
    %v80 = vlaneseq
    %v81 = vshrl.u32 %v80, 7
    %v82 = vsub.s32 1, %v81
    %v83 = vrot.slane %v74, %v82
    %vm86 = vcmask 171008
    %v88 = vsel %vm86, %v66, 0
    %v91 = vsel %vm86, %v67, 0
    %vm93 = vcmask 1044480
    %v95 = vsel %vm93, %v72, 0
    %v98 = vsel %vm93, %v73, 0
    %100 = vmatprep.subr.mxu0 %v69
    %101 = vmatpush1.msra.mxu0 %v68
    %102 = vmatprep.subr.mxu0 %v71
    %103 = vmatpush1.msra.mxu0 %v70
    %104 = vmatprep.subr.mxu0 %v98
    %105 = vmatpush1.msra.mxu0 %v95
    %106 = vmatprep.subr.mxu0 0.0
    %107 = vmatpush1.msra.mxu0 0.0
    %108 = vmatprep.subr.mxu0 0.0
    %109 = vmatpush1.msra.mxu0 0.0
    %110 = vmatprep.subr.mxu0 0.0
    %111 = vmatpush1.msra.mxu0 0.0
    %112 = vmatprep.subr.mxu0 0.0
    %113 = vmatpush1.msra.mxu0 0.0
    %114 = vmatprep.subr.mxu0 0.0
    %115 = vmatpush1.msra.mxu0 0.0
    %116 = vmatprep.subr.mxu0 0.0
    %117 = vmatpush1.msra.mxu0 0.0
    %118 = vmatprep.subr.mxu0 0.0
    %119 = vmatpush1.msra.mxu0 0.0
    %120 = vmatprep.subr.mxu0 0.0
    %121 = vmatpush1.msra.mxu0 0.0
    %122 = vmatprep.subr.mxu0 0.0
    %123 = vmatpush1.msra.mxu0 0.0
    %124 = vmatprep.subr.mxu0 0.0
    %125 = vmatpush1.msra.mxu0 0.0
    %126 = vmatprep.subr.mxu0 0.0
    %127 = vmatpush1.msra.mxu0 0.0
    %128 = vmatprep.subr.mxu0 0.0
    %129 = vmatpush1.msra.mxu0 0.0
    %130 = vmatprep.subr.mxu0 0.0
    %131 = vmatpush1.msra.mxu0 0.0
    %132 = vmatprep.subr.mxu0 0.0
    %133 = vmatpush1.msra.mxu0 0.0
    %134 = vmatprep.subr.mxu0 0.0
    %135 = vmatpush1.msra.mxu0 0.0
    %136 = vmatprep.subr.mxu0 0.0
    %137 = vmatpush1.msra.mxu0 0.0
    %138 = vmatprep.subr.mxu0 0.0
    %139 = vmatpush1.msra.mxu0 0.0
    %140 = vmatprep.subr.mxu0 0.0
    %141 = vmatpush1.msra.mxu0 0.0
    %142 = vmatprep.subr.mxu0 0.0
    %143 = vmatpush1.msra.mxu0 0.0
    %144 = vmatprep.subr.mxu0 0.0
    %145 = vmatpush1.msra.mxu0 0.0
    %146 = vmatprep.subr.mxu0 0.0
    %147 = vmatpush1.msra.mxu0 0.0
    %148 = vmatprep.subr.mxu0 0.0
    %149 = vmatpush1.msra.mxu0 0.0
    %150 = vmatprep.subr.mxu0 0.0
    %151 = vmatpush1.msra.mxu0 0.0
    %152 = vmatprep.subr.mxu0 0.0
    %153 = vmatpush1.msra.mxu0 0.0
    %154 = vmatprep.subr.mxu0 0.0
    %155 = vmatpush1.msra.mxu0 0.0
    %156 = vmatprep.subr.mxu0 0.0
    %157 = vmatpush1.msra.mxu0 0.0
    %158 = vmatprep.subr.mxu0 0.0
    %159 = vmatpush1.msra.mxu0 0.0
    %160 = vmatprep.subr.mxu0 0.0
    %161 = vmatpush1.msra.mxu0 0.0
    %162 = vmatprep.subr.mxu0 0.0
    %163 = vmatpush1.msra.mxu0 0.0
    %164 = vmatprep.mubr.f32.mxu0 0.0
    %165 = vmatmul.mubr.f32.gmra.mrb[0].mxu0 %v88
    %v166 = vpop.f32.mrb[0].mxu0
    %v167 = vadd.f32 %v79, %v166
    %v168 = vpop.f32.mrb[0].mxu0
    %v169 = vadd.f32 %v83, %v168
    %170 = vmatprep.mubr.f32.mxu0 0.0
    %171 = vmatmul.mubr.f32.gmra.mrb[0].mxu0 %v91
    %v172 = vpop.f32.mrb[0].mxu0
    %v173 = vadd.f32 %v79, %v172
    %v174 = vpop.f32.mrb[0].mxu0
    %v175 = vadd.f32 %v83, %v174
    %176 = vdwg.mxu0
    %v177 = vmul.f32 %v167, 0.5
    %v178 = vmul.f32 %v169, 0.5
    %v179 = vtanh.pop %v177
    %v180 = vtanh.pop %v178
    %v181 = vmul.f32 %v179, 0.5
    %v182 = vmul.f32 %v180, 0.5
    %v183 = vadd.f32 %v181, 0.5
    %v184 = vadd.f32 %v182, 0.5
    %v185 = vtanh.pop %v169
    %v186 = vmul.f32 %v183, 0.0
    %v187 = vmul.f32 %v183, %v185
    %189 = vrot.lane.b32.xlu0 %v187, 64
    %v190 = vpop.permute.xlu0 %189
    %v192 = vadd.f32 %v186, %v190
    %v193 = vtanh.pop %v192
    %v194 = vmul.f32 %v184, %v193
    %v195 = vlaneseq
    %v196 = vand.u32 %v195, 127
    %vm197 = vcmp.lt.s32.totalorder %v196, 32
    %199 = vrot.lane.b32.xlu0 %v194, 64
    %v200 = vpop.permute.xlu0 %199
    %v202 = vsel %vm197, %v200, 0.0
    %204 = vrot.lane.b32.xlu0 %v192, 64
    %v205 = vpop.permute.xlu0 %204
    %v207 = vsel %vm197, %v205, 0.0
    %v208 = vld [vmem:[#allocation7] sm:$0xff]
    %v209 = vld [vmem:[#allocation7 + $0x8] sm:$0xff]
    %v210 = vld [vmem:[#allocation7 + $0x10] sm:$0xff]
    %v211 = vld [vmem:[#allocation7 + $0x18] sm:$0xff]
    %v212 = vld [vmem:[#allocation7 + $0x20] sm:$0xff]
    %v213 = vld [vmem:[#allocation7 + $0x28] sm:$0xff]
    %v214 = vld [vmem:[#allocation7 + $0x30] sm:$0xff]
    %v215 = vld [vmem:[#allocation7 + $0x38] sm:$0xff]
    %v216 = vld [vmem:[#allocation7 + $0x40] sm:$0xff]
    %v217 = vld [vmem:[#allocation7 + $0x48] sm:$0xff]
    %v218 = vld [vmem:[#allocation7 + $0x50] sm:$0xff]
    %v219 = vld [vmem:[#allocation7 + $0x58] sm:$0xff]
    %v220 = vld [vmem:[#allocation7 + $0x60] sm:$0xff]
    %v221 = vld [vmem:[#allocation7 + $0x68] sm:$0xff]
    %v222 = vld [vmem:[#allocation7 + $0x70] sm:$0xff]
    %v223 = vld [vmem:[#allocation7 + $0x78] sm:$0xff]
    %v226 = vrot.slane %v167, 2
    %v227 = vrot.slane %v169, 2
    %vm230 = vcmask 523264
    %v232 = vsel %vm230, %v202, 0
    %234 = vmatprep.subr.mxu0 %v209
    %235 = vmatpush1.msra.mxu0 %v208
    %236 = vmatprep.subr.mxu0 %v211
    %237 = vmatpush1.msra.mxu0 %v210
    %238 = vmatprep.subr.mxu0 %v213
    %239 = vmatpush1.msra.mxu0 %v212
    %240 = vmatprep.subr.mxu0 %v215
    %241 = vmatpush1.msra.mxu0 %v214
    %242 = vmatprep.subr.mxu0 %v217
    %243 = vmatpush1.msra.mxu0 %v216
    %244 = vmatprep.subr.mxu0 %v219
    %245 = vmatpush1.msra.mxu0 %v218
    %246 = vmatprep.subr.mxu0 %v221
    %247 = vmatpush1.msra.mxu0 %v220
    %248 = vmatprep.subr.mxu0 %v223
    %249 = vmatpush1.msra.mxu0 %v222
    %250 = vmatprep.subr.mxu0 0.0
    %251 = vmatpush1.msra.mxu0 0.0
    %252 = vmatprep.subr.mxu0 0.0
    %253 = vmatpush1.msra.mxu0 0.0
    %254 = vmatprep.subr.mxu0 0.0
    %255 = vmatpush1.msra.mxu0 0.0
    %256 = vmatprep.subr.mxu0 0.0
    %257 = vmatpush1.msra.mxu0 0.0
    %258 = vmatprep.subr.mxu0 0.0
    %259 = vmatpush1.msra.mxu0 0.0
    %260 = vmatprep.subr.mxu0 0.0
    %261 = vmatpush1.msra.mxu0 0.0
    %262 = vmatprep.subr.mxu0 0.0
    %263 = vmatpush1.msra.mxu0 0.0
    %264 = vmatprep.subr.mxu0 0.0
    %265 = vmatpush1.msra.mxu0 0.0
    %266 = vmatprep.subr.mxu0 0.0
    %267 = vmatpush1.msra.mxu0 0.0
    %268 = vmatprep.subr.mxu0 0.0
    %269 = vmatpush1.msra.mxu0 0.0
    %270 = vmatprep.subr.mxu0 0.0
    %271 = vmatpush1.msra.mxu0 0.0
    %272 = vmatprep.subr.mxu0 0.0
    %273 = vmatpush1.msra.mxu0 0.0
    %274 = vmatprep.subr.mxu0 0.0
    %275 = vmatpush1.msra.mxu0 0.0
    %276 = vmatprep.subr.mxu0 0.0
    %277 = vmatpush1.msra.mxu0 0.0
    %278 = vmatprep.subr.mxu0 0.0
    %279 = vmatpush1.msra.mxu0 0.0
    %280 = vmatprep.subr.mxu0 0.0
    %281 = vmatpush1.msra.mxu0 0.0
    %282 = vmatprep.subr.mxu0 0.0
    %283 = vmatpush1.msra.mxu0 0.0
    %284 = vmatprep.subr.mxu0 0.0
    %285 = vmatpush1.msra.mxu0 0.0
    %286 = vmatprep.subr.mxu0 0.0
    %287 = vmatpush1.msra.mxu0 0.0
    %288 = vmatprep.subr.mxu0 0.0
    %289 = vmatpush1.msra.mxu0 0.0
    %290 = vmatprep.subr.mxu0 0.0
    %291 = vmatpush1.msra.mxu0 0.0
    %292 = vmatprep.subr.mxu0 0.0
    %293 = vmatpush1.msra.mxu0 0.0
    %294 = vmatprep.subr.mxu0 0.0
    %295 = vmatpush1.msra.mxu0 0.0
    %296 = vmatprep.subr.mxu0 0.0
    %297 = vmatpush1.msra.mxu0 0.0
    %298 = vmatprep.mubr.f32.mxu0 0.0
    %299 = vmatmul.mubr.f32.gmra.mrb[0].mxu0 %v232
    %v300 = vpop.f32.mrb[0].mxu0
    %v301 = vadd.f32 %v226, %v300
    %v302 = vpop.f32.mrb[0].mxu0
    %v303 = vadd.f32 %v227, %v302
    %304 = vdwg.mxu0
    %v305 = vmul.f32 %v301, 0.5
    %v306 = vmul.f32 %v303, 0.5
    %v307 = vtanh.pop %v305
    %v308 = vtanh.pop %v306
    %v309 = vmul.f32 %v307, 0.5
    %v310 = vmul.f32 %v308, 0.5
    %v311 = vadd.f32 %v309, 0.5
    %v312 = vadd.f32 %v310, 0.5
    %v313 = vtanh.pop %v303
    %315 = vrot.lane.b32.xlu0 %v207, 64
    %v316 = vpop.permute.xlu0 %315
    %v318 = vmul.f32 %v311, %v316
    %v319 = vmul.f32 %v311, %v313
    %321 = vrot.lane.b32.xlu0 %v319, 64
    %v322 = vpop.permute.xlu0 %321
    %v324 = vadd.f32 %v318, %v322
    %v325 = vtanh.pop %v324
    %v326 = vmul.f32 %v312, %v325
    %328 = vrot.lane.b32.xlu0 %v326, 64
    %v329 = vpop.permute.xlu0 %328
    %v330 = vrot.slane %v167, 4
    %v331 = vrot.slane %v169, 4
    %v334 = vsel %vm230, %v329, 0
    %336 = vmatprep.subr.mxu0 %v209
    %337 = vmatpush1.msra.mxu0 %v208
    %338 = vmatprep.subr.mxu0 %v211
    %339 = vmatpush1.msra.mxu0 %v210
    %340 = vmatprep.subr.mxu0 %v213
    %341 = vmatpush1.msra.mxu0 %v212
    %342 = vmatprep.subr.mxu0 %v215
    %343 = vmatpush1.msra.mxu0 %v214
    %344 = vmatprep.subr.mxu0 %v217
    %345 = vmatpush1.msra.mxu0 %v216
    %346 = vmatprep.subr.mxu0 %v219
    %347 = vmatpush1.msra.mxu0 %v218
    %348 = vmatprep.subr.mxu0 %v221
    %349 = vmatpush1.msra.mxu0 %v220
    %350 = vmatprep.subr.mxu0 %v223
    %351 = vmatpush1.msra.mxu0 %v222
    %352 = vmatprep.subr.mxu0 0.0
    %353 = vmatpush1.msra.mxu0 0.0
    %354 = vmatprep.subr.mxu0 0.0
    %355 = vmatpush1.msra.mxu0 0.0
    %356 = vmatprep.subr.mxu0 0.0
    %357 = vmatpush1.msra.mxu0 0.0
    %358 = vmatprep.subr.mxu0 0.0
    %359 = vmatpush1.msra.mxu0 0.0
    %360 = vmatprep.subr.mxu0 0.0
    %361 = vmatpush1.msra.mxu0 0.0
    %362 = vmatprep.subr.mxu0 0.0
    %363 = vmatpush1.msra.mxu0 0.0
    %364 = vmatprep.subr.mxu0 0.0
    %365 = vmatpush1.msra.mxu0 0.0
    %366 = vmatprep.subr.mxu0 0.0
    %367 = vmatpush1.msra.mxu0 0.0
    %368 = vmatprep.subr.mxu0 0.0
    %369 = vmatpush1.msra.mxu0 0.0
    %370 = vmatprep.subr.mxu0 0.0
    %371 = vmatpush1.msra.mxu0 0.0
    %372 = vmatprep.subr.mxu0 0.0
    %373 = vmatpush1.msra.mxu0 0.0
    %374 = vmatprep.subr.mxu0 0.0
    %375 = vmatpush1.msra.mxu0 0.0
    %376 = vmatprep.subr.mxu0 0.0
    %377 = vmatpush1.msra.mxu0 0.0
    %378 = vmatprep.subr.mxu0 0.0
    %379 = vmatpush1.msra.mxu0 0.0
    %380 = vmatprep.subr.mxu0 0.0
    %381 = vmatpush1.msra.mxu0 0.0
    %382 = vmatprep.subr.mxu0 0.0
    %383 = vmatpush1.msra.mxu0 0.0
    %384 = vmatprep.subr.mxu0 0.0
    %385 = vmatpush1.msra.mxu0 0.0
    %386 = vmatprep.subr.mxu0 0.0
    %387 = vmatpush1.msra.mxu0 0.0
    %388 = vmatprep.subr.mxu0 0.0
    %389 = vmatpush1.msra.mxu0 0.0
    %390 = vmatprep.subr.mxu0 0.0
    %391 = vmatpush1.msra.mxu0 0.0
    %392 = vmatprep.subr.mxu0 0.0
    %393 = vmatpush1.msra.mxu0 0.0
    %394 = vmatprep.subr.mxu0 0.0
    %395 = vmatpush1.msra.mxu0 0.0
    %396 = vmatprep.subr.mxu0 0.0
    %397 = vmatpush1.msra.mxu0 0.0
    %398 = vmatprep.subr.mxu0 0.0
    %399 = vmatpush1.msra.mxu0 0.0
    %400 = vmatprep.mubr.f32.mxu0 0.0
    %401 = vmatmul.mubr.f32.gmra.mrb[0].mxu0 %v334
    %v402 = vpop.f32.mrb[0].mxu0
    %v403 = vadd.f32 %v330, %v402
    %v404 = vpop.f32.mrb[0].mxu0
    %v405 = vadd.f32 %v331, %v404
    %406 = vdwg.mxu0
    %v407 = vmul.f32 %v403, 0.5
    %v408 = vmul.f32 %v405, 0.5
    %v409 = vtanh.pop %v407
    %v410 = vtanh.pop %v408
    %v411 = vmul.f32 %v409, 0.5
    %v412 = vmul.f32 %v410, 0.5
    %v413 = vadd.f32 %v411, 0.5
    %v414 = vadd.f32 %v412, 0.5
    %v415 = vtanh.pop %v405
    %v416 = vmul.f32 %v413, %v324
    %v417 = vmul.f32 %v413, %v415
    %419 = vrot.lane.b32.xlu0 %v417, 64
    %v420 = vpop.permute.xlu0 %419
    %v422 = vadd.f32 %v416, %v420
    %v423 = vtanh.pop %v422
    %v424 = vmul.f32 %v414, %v423
    %426 = vrot.lane.b32.xlu0 %v424, 64
    %v427 = vpop.permute.xlu0 %426
    %v428 = vrot.slane %v167, 6
    %v429 = vrot.slane %v169, 6
    %v432 = vsel %vm230, %v427, 0
    %434 = vmatprep.subr.mxu0 %v209
    %435 = vmatpush1.msra.mxu0 %v208
    %436 = vmatprep.subr.mxu0 %v211
    %437 = vmatpush1.msra.mxu0 %v210
    %438 = vmatprep.subr.mxu0 %v213
    %439 = vmatpush1.msra.mxu0 %v212
    %440 = vmatprep.subr.mxu0 %v215
    %441 = vmatpush1.msra.mxu0 %v214
    %442 = vmatprep.subr.mxu0 %v217
    %443 = vmatpush1.msra.mxu0 %v216
    %444 = vmatprep.subr.mxu0 %v219
    %445 = vmatpush1.msra.mxu0 %v218
    %446 = vmatprep.subr.mxu0 %v221
    %447 = vmatpush1.msra.mxu0 %v220
    %448 = vmatprep.subr.mxu0 %v223
    %449 = vmatpush1.msra.mxu0 %v222
    %450 = vmatprep.subr.mxu0 0.0
    %451 = vmatpush1.msra.mxu0 0.0
    %452 = vmatprep.subr.mxu0 0.0
    %453 = vmatpush1.msra.mxu0 0.0
    %454 = vmatprep.subr.mxu0 0.0
    %455 = vmatpush1.msra.mxu0 0.0
    %456 = vmatprep.subr.mxu0 0.0
    %457 = vmatpush1.msra.mxu0 0.0
    %458 = vmatprep.subr.mxu0 0.0
    %459 = vmatpush1.msra.mxu0 0.0
    %460 = vmatprep.subr.mxu0 0.0
    %461 = vmatpush1.msra.mxu0 0.0
    %462 = vmatprep.subr.mxu0 0.0
    %463 = vmatpush1.msra.mxu0 0.0
    %464 = vmatprep.subr.mxu0 0.0
    %465 = vmatpush1.msra.mxu0 0.0
    %466 = vmatprep.subr.mxu0 0.0
    %467 = vmatpush1.msra.mxu0 0.0
    %468 = vmatprep.subr.mxu0 0.0
    %469 = vmatpush1.msra.mxu0 0.0
    %470 = vmatprep.subr.mxu0 0.0
    %471 = vmatpush1.msra.mxu0 0.0
    %472 = vmatprep.subr.mxu0 0.0
    %473 = vmatpush1.msra.mxu0 0.0
    %474 = vmatprep.subr.mxu0 0.0
    %475 = vmatpush1.msra.mxu0 0.0
    %476 = vmatprep.subr.mxu0 0.0
    %477 = vmatpush1.msra.mxu0 0.0
    %478 = vmatprep.subr.mxu0 0.0
    %479 = vmatpush1.msra.mxu0 0.0
    %480 = vmatprep.subr.mxu0 0.0
    %481 = vmatpush1.msra.mxu0 0.0
    %482 = vmatprep.subr.mxu0 0.0
    %483 = vmatpush1.msra.mxu0 0.0
    %484 = vmatprep.subr.mxu0 0.0
    %485 = vmatpush1.msra.mxu0 0.0
    %486 = vmatprep.subr.mxu0 0.0
    %487 = vmatpush1.msra.mxu0 0.0
    %488 = vmatprep.subr.mxu0 0.0
    %489 = vmatpush1.msra.mxu0 0.0
    %490 = vmatprep.subr.mxu0 0.0
    %491 = vmatpush1.msra.mxu0 0.0
    %492 = vmatprep.subr.mxu0 0.0
    %493 = vmatpush1.msra.mxu0 0.0
    %494 = vmatprep.subr.mxu0 0.0
    %495 = vmatpush1.msra.mxu0 0.0
    %496 = vmatprep.subr.mxu0 0.0
    %497 = vmatpush1.msra.mxu0 0.0
    %498 = vmatprep.mubr.f32.mxu0 0.0
    %499 = vmatmul.mubr.f32.gmra.mrb[0].mxu0 %v432
    %v500 = vpop.f32.mrb[0].mxu0
    %v501 = vadd.f32 %v428, %v500
    %v502 = vpop.f32.mrb[0].mxu0
    %v503 = vadd.f32 %v429, %v502
    %504 = vdwg.mxu0
    %v505 = vmul.f32 %v501, 0.5
    %v506 = vmul.f32 %v503, 0.5
    %v507 = vtanh.pop %v505
    %v508 = vtanh.pop %v506
    %v509 = vmul.f32 %v507, 0.5
    %v510 = vmul.f32 %v508, 0.5
    %v511 = vadd.f32 %v509, 0.5
    %v512 = vadd.f32 %v510, 0.5
    %v513 = vtanh.pop %v503
    %v514 = vmul.f32 %v511, %v422
    %v515 = vmul.f32 %v511, %v513
    %517 = vrot.lane.b32.xlu0 %v515, 64
    %v518 = vpop.permute.xlu0 %517
    %v520 = vadd.f32 %v514, %v518
    %v521 = vtanh.pop %v520
    %v522 = vmul.f32 %v512, %v521
    %524 = vrot.lane.b32.xlu0 %v522, 64
    %v525 = vpop.permute.xlu0 %524
    %v526 = vsel %vm230, %v525, 0
    %528 = vmatprep.subr.mxu0 %v209
    %529 = vmatpush1.msra.mxu0 %v208
    %530 = vmatprep.subr.mxu0 %v211
    %531 = vmatpush1.msra.mxu0 %v210
    %532 = vmatprep.subr.mxu0 %v213
    %533 = vmatpush1.msra.mxu0 %v212
    %534 = vmatprep.subr.mxu0 %v215
    %535 = vmatpush1.msra.mxu0 %v214
    %536 = vmatprep.subr.mxu0 %v217
    %537 = vmatpush1.msra.mxu0 %v216
    %538 = vmatprep.subr.mxu0 %v219
    %539 = vmatpush1.msra.mxu0 %v218
    %540 = vmatprep.subr.mxu0 %v221
    %541 = vmatpush1.msra.mxu0 %v220
    %542 = vmatprep.subr.mxu0 %v223
    %543 = vmatpush1.msra.mxu0 %v222
    %544 = vmatprep.subr.mxu0 0.0
    %545 = vmatpush1.msra.mxu0 0.0
    %546 = vmatprep.subr.mxu0 0.0
    %547 = vmatpush1.msra.mxu0 0.0
    %548 = vmatprep.subr.mxu0 0.0
    %549 = vmatpush1.msra.mxu0 0.0
    %550 = vmatprep.subr.mxu0 0.0
    %551 = vmatpush1.msra.mxu0 0.0
    %552 = vmatprep.subr.mxu0 0.0
    %553 = vmatpush1.msra.mxu0 0.0
    %554 = vmatprep.subr.mxu0 0.0
    %555 = vmatpush1.msra.mxu0 0.0
    %556 = vmatprep.subr.mxu0 0.0
    %557 = vmatpush1.msra.mxu0 0.0
    %558 = vmatprep.subr.mxu0 0.0
    %559 = vmatpush1.msra.mxu0 0.0
    %560 = vmatprep.subr.mxu0 0.0
    %561 = vmatpush1.msra.mxu0 0.0
    %562 = vmatprep.subr.mxu0 0.0
    %563 = vmatpush1.msra.mxu0 0.0
    %564 = vmatprep.subr.mxu0 0.0
    %565 = vmatpush1.msra.mxu0 0.0
    %566 = vmatprep.subr.mxu0 0.0
    %567 = vmatpush1.msra.mxu0 0.0
    %568 = vmatprep.subr.mxu0 0.0
    %569 = vmatpush1.msra.mxu0 0.0
    %570 = vmatprep.subr.mxu0 0.0
    %571 = vmatpush1.msra.mxu0 0.0
    %572 = vmatprep.subr.mxu0 0.0
    %573 = vmatpush1.msra.mxu0 0.0
    %574 = vmatprep.subr.mxu0 0.0
    %575 = vmatpush1.msra.mxu0 0.0
    %576 = vmatprep.subr.mxu0 0.0
    %577 = vmatpush1.msra.mxu0 0.0
    %578 = vmatprep.subr.mxu0 0.0
    %579 = vmatpush1.msra.mxu0 0.0
    %580 = vmatprep.subr.mxu0 0.0
    %581 = vmatpush1.msra.mxu0 0.0
    %582 = vmatprep.subr.mxu0 0.0
    %583 = vmatpush1.msra.mxu0 0.0
    %584 = vmatprep.subr.mxu0 0.0
    %585 = vmatpush1.msra.mxu0 0.0
    %586 = vmatprep.subr.mxu0 0.0
    %587 = vmatpush1.msra.mxu0 0.0
    %588 = vmatprep.subr.mxu0 0.0
    %589 = vmatpush1.msra.mxu0 0.0
    %590 = vmatprep.subr.mxu0 0.0
    %591 = vmatpush1.msra.mxu0 0.0
    %592 = vmatprep.mubr.f32.mxu0 0.0
    %593 = vmatmul.mubr.f32.gmra.mrb[0].mxu0 %v526
    %v594 = vpop.f32.mrb[0].mxu0
    %v595 = vadd.f32 %v173, %v594
    %v596 = vpop.f32.mrb[0].mxu0
    %v597 = vadd.f32 %v175, %v596
    %598 = vdwg.mxu0
    %v599 = vmul.f32 %v595, 0.5
    %v600 = vmul.f32 %v597, 0.5
    %v601 = vtanh.pop %v599
    %v602 = vtanh.pop %v600
    %v603 = vmul.f32 %v601, 0.5
    %v604 = vmul.f32 %v602, 0.5
    %v605 = vadd.f32 %v603, 0.5
    %v606 = vadd.f32 %v604, 0.5
    %v607 = vtanh.pop %v597
    %v608 = vmul.f32 %v605, %v520
    %v609 = vmul.f32 %v605, %v607
    %611 = vrot.lane.b32.xlu0 %v609, 64
    %v612 = vpop.permute.xlu0 %611
    %v614 = vadd.f32 %v608, %v612
    %v615 = vtanh.pop %v614
    %v616 = vmul.f32 %v606, %v615
    %618 = vrot.lane.b32.xlu0 %v616, 64
    %v619 = vpop.permute.xlu0 %618
    %v622 = vrot.slane %v173, 2
    %v623 = vrot.slane %v175, 2
    %v626 = vsel %vm230, %v619, 0
    %628 = vmatprep.subr.mxu0 %v209
    %629 = vmatpush1.msra.mxu0 %v208
    %630 = vmatprep.subr.mxu0 %v211
    %631 = vmatpush1.msra.mxu0 %v210
    %632 = vmatprep.subr.mxu0 %v213
    %633 = vmatpush1.msra.mxu0 %v212
    %634 = vmatprep.subr.mxu0 %v215
    %635 = vmatpush1.msra.mxu0 %v214
    %636 = vmatprep.subr.mxu0 %v217
    %637 = vmatpush1.msra.mxu0 %v216
    %638 = vmatprep.subr.mxu0 %v219
    %639 = vmatpush1.msra.mxu0 %v218
    %640 = vmatprep.subr.mxu0 %v221
    %641 = vmatpush1.msra.mxu0 %v220
    %642 = vmatprep.subr.mxu0 %v223
    %643 = vmatpush1.msra.mxu0 %v222
    %644 = vmatprep.subr.mxu0 0.0
    %645 = vmatpush1.msra.mxu0 0.0
    %646 = vmatprep.subr.mxu0 0.0
    %647 = vmatpush1.msra.mxu0 0.0
    %648 = vmatprep.subr.mxu0 0.0
    %649 = vmatpush1.msra.mxu0 0.0
    %650 = vmatprep.subr.mxu0 0.0
    %651 = vmatpush1.msra.mxu0 0.0
    %652 = vmatprep.subr.mxu0 0.0
    %653 = vmatpush1.msra.mxu0 0.0
    %654 = vmatprep.subr.mxu0 0.0
    %655 = vmatpush1.msra.mxu0 0.0
    %656 = vmatprep.subr.mxu0 0.0
    %657 = vmatpush1.msra.mxu0 0.0
    %658 = vmatprep.subr.mxu0 0.0
    %659 = vmatpush1.msra.mxu0 0.0
    %660 = vmatprep.subr.mxu0 0.0
    %661 = vmatpush1.msra.mxu0 0.0
    %662 = vmatprep.subr.mxu0 0.0
    %663 = vmatpush1.msra.mxu0 0.0
    %664 = vmatprep.subr.mxu0 0.0
    %665 = vmatpush1.msra.mxu0 0.0
    %666 = vmatprep.subr.mxu0 0.0
    %667 = vmatpush1.msra.mxu0 0.0
    %668 = vmatprep.subr.mxu0 0.0
    %669 = vmatpush1.msra.mxu0 0.0
    %670 = vmatprep.subr.mxu0 0.0
    %671 = vmatpush1.msra.mxu0 0.0
    %672 = vmatprep.subr.mxu0 0.0
    %673 = vmatpush1.msra.mxu0 0.0
    %674 = vmatprep.subr.mxu0 0.0
    %675 = vmatpush1.msra.mxu0 0.0
    %676 = vmatprep.subr.mxu0 0.0
    %677 = vmatpush1.msra.mxu0 0.0
    %678 = vmatprep.subr.mxu0 0.0
    %679 = vmatpush1.msra.mxu0 0.0
    %680 = vmatprep.subr.mxu0 0.0
    %681 = vmatpush1.msra.mxu0 0.0
    %682 = vmatprep.subr.mxu0 0.0
    %683 = vmatpush1.msra.mxu0 0.0
    %684 = vmatprep.subr.mxu0 0.0
    %685 = vmatpush1.msra.mxu0 0.0
    %686 = vmatprep.subr.mxu0 0.0
    %687 = vmatpush1.msra.mxu0 0.0
    %688 = vmatprep.subr.mxu0 0.0
    %689 = vmatpush1.msra.mxu0 0.0
    %690 = vmatprep.subr.mxu0 0.0
    %691 = vmatpush1.msra.mxu0 0.0
    %692 = vmatprep.mubr.f32.mxu0 0.0
    %693 = vmatmul.mubr.f32.gmra.mrb[0].mxu0 %v626
    %v694 = vpop.f32.mrb[0].mxu0
    %v695 = vadd.f32 %v622, %v694
    %v696 = vpop.f32.mrb[0].mxu0
    %v697 = vadd.f32 %v623, %v696
    %698 = vdwg.mxu0
    %v699 = vmul.f32 %v695, 0.5
    %v700 = vmul.f32 %v697, 0.5
    %v701 = vtanh.pop %v699
    %v702 = vtanh.pop %v700
    %v703 = vmul.f32 %v701, 0.5
    %v704 = vmul.f32 %v702, 0.5
    %v705 = vadd.f32 %v703, 0.5
    %v706 = vadd.f32 %v704, 0.5
    %v707 = vtanh.pop %v697
    %v708 = vmul.f32 %v705, %v614
    %v709 = vmul.f32 %v705, %v707
    %711 = vrot.lane.b32.xlu0 %v709, 64
    %v712 = vpop.permute.xlu0 %711
    %v714 = vadd.f32 %v708, %v712
    %v715 = vtanh.pop %v714
    %v716 = vmul.f32 %v706, %v715
    %718 = vrot.lane.b32.xlu0 %v716, 64
    %v719 = vpop.permute.xlu0 %718
    %v720 = vrot.slane %v173, 4
    %v721 = vrot.slane %v175, 4
    %v724 = vsel %vm230, %v719, 0
    %726 = vmatprep.subr.mxu0 %v209
    %727 = vmatpush1.msra.mxu0 %v208
    %728 = vmatprep.subr.mxu0 %v211
    %729 = vmatpush1.msra.mxu0 %v210
    %730 = vmatprep.subr.mxu0 %v213
    %731 = vmatpush1.msra.mxu0 %v212
    %732 = vmatprep.subr.mxu0 %v215
    %733 = vmatpush1.msra.mxu0 %v214
    %734 = vmatprep.subr.mxu0 %v217
    %735 = vmatpush1.msra.mxu0 %v216
    %736 = vmatprep.subr.mxu0 %v219
    %737 = vmatpush1.msra.mxu0 %v218
    %738 = vmatprep.subr.mxu0 %v221
    %739 = vmatpush1.msra.mxu0 %v220
    %740 = vmatprep.subr.mxu0 %v223
    %741 = vmatpush1.msra.mxu0 %v222
    %742 = vmatprep.subr.mxu0 0.0
    %743 = vmatpush1.msra.mxu0 0.0
    %744 = vmatprep.subr.mxu0 0.0
    %745 = vmatpush1.msra.mxu0 0.0
    %746 = vmatprep.subr.mxu0 0.0
    %747 = vmatpush1.msra.mxu0 0.0
    %748 = vmatprep.subr.mxu0 0.0
    %749 = vmatpush1.msra.mxu0 0.0
    %750 = vmatprep.subr.mxu0 0.0
    %751 = vmatpush1.msra.mxu0 0.0
    %752 = vmatprep.subr.mxu0 0.0
    %753 = vmatpush1.msra.mxu0 0.0
    %754 = vmatprep.subr.mxu0 0.0
    %755 = vmatpush1.msra.mxu0 0.0
    %756 = vmatprep.subr.mxu0 0.0
    %757 = vmatpush1.msra.mxu0 0.0
    %758 = vmatprep.subr.mxu0 0.0
    %759 = vmatpush1.msra.mxu0 0.0
    %760 = vmatprep.subr.mxu0 0.0
    %761 = vmatpush1.msra.mxu0 0.0
    %762 = vmatprep.subr.mxu0 0.0
    %763 = vmatpush1.msra.mxu0 0.0
    %764 = vmatprep.subr.mxu0 0.0
    %765 = vmatpush1.msra.mxu0 0.0
    %766 = vmatprep.subr.mxu0 0.0
    %767 = vmatpush1.msra.mxu0 0.0
    %768 = vmatprep.subr.mxu0 0.0
    %769 = vmatpush1.msra.mxu0 0.0
    %770 = vmatprep.subr.mxu0 0.0
    %771 = vmatpush1.msra.mxu0 0.0
    %772 = vmatprep.subr.mxu0 0.0
    %773 = vmatpush1.msra.mxu0 0.0
    %774 = vmatprep.subr.mxu0 0.0
    %775 = vmatpush1.msra.mxu0 0.0
    %776 = vmatprep.subr.mxu0 0.0
    %777 = vmatpush1.msra.mxu0 0.0
    %778 = vmatprep.subr.mxu0 0.0
    %779 = vmatpush1.msra.mxu0 0.0
    %780 = vmatprep.subr.mxu0 0.0
    %781 = vmatpush1.msra.mxu0 0.0
    %782 = vmatprep.subr.mxu0 0.0
    %783 = vmatpush1.msra.mxu0 0.0
    %784 = vmatprep.subr.mxu0 0.0
    %785 = vmatpush1.msra.mxu0 0.0
    %786 = vmatprep.subr.mxu0 0.0
    %787 = vmatpush1.msra.mxu0 0.0
    %788 = vmatprep.subr.mxu0 0.0
    %789 = vmatpush1.msra.mxu0 0.0
    %790 = vmatprep.mubr.f32.mxu0 0.0
    %791 = vmatmul.mubr.f32.gmra.mrb[0].mxu0 %v724
    %v792 = vpop.f32.mrb[0].mxu0
    %v793 = vadd.f32 %v720, %v792
    %v794 = vpop.f32.mrb[0].mxu0
    %v795 = vadd.f32 %v721, %v794
    %796 = vdwg.mxu0
    %v797 = vmul.f32 %v793, 0.5
    %v798 = vmul.f32 %v795, 0.5
    %v799 = vtanh.pop %v797
    %v800 = vtanh.pop %v798
    %v801 = vmul.f32 %v799, 0.5
    %v802 = vmul.f32 %v800, 0.5
    %v803 = vadd.f32 %v801, 0.5
    %v804 = vadd.f32 %v802, 0.5
    %v805 = vtanh.pop %v795
    %v806 = vmul.f32 %v803, %v714
    %v807 = vmul.f32 %v803, %v805
    %809 = vrot.lane.b32.xlu0 %v807, 64
    %v810 = vpop.permute.xlu0 %809
    %v812 = vadd.f32 %v806, %v810
    %v813 = vtanh.pop %v812
    %v814 = vmul.f32 %v804, %v813
    %816 = vrot.lane.b32.xlu0 %v814, 64
    %v817 = vpop.permute.xlu0 %816
    %v818 = vrot.slane %v173, 6
    %v819 = vrot.slane %v175, 6
    %v822 = vsel %vm230, %v817, 0
    %824 = vmatprep.subr.mxu0 %v209
    %825 = vmatpush1.msra.mxu0 %v208
    %826 = vmatprep.subr.mxu0 %v211
    %827 = vmatpush1.msra.mxu0 %v210
    %828 = vmatprep.subr.mxu0 %v213
    %829 = vmatpush1.msra.mxu0 %v212
    %830 = vmatprep.subr.mxu0 %v215
    %831 = vmatpush1.msra.mxu0 %v214
    %832 = vmatprep.subr.mxu0 %v217
    %833 = vmatpush1.msra.mxu0 %v216
    %834 = vmatprep.subr.mxu0 %v219
    %835 = vmatpush1.msra.mxu0 %v218
    %836 = vmatprep.subr.mxu0 %v221
    %837 = vmatpush1.msra.mxu0 %v220
    %838 = vmatprep.subr.mxu0 %v223
    %839 = vmatpush1.msra.mxu0 %v222
    %840 = vmatprep.subr.mxu0 0.0
    %841 = vmatpush1.msra.mxu0 0.0
    %842 = vmatprep.subr.mxu0 0.0
    %843 = vmatpush1.msra.mxu0 0.0
    %844 = vmatprep.subr.mxu0 0.0
    %845 = vmatpush1.msra.mxu0 0.0
    %846 = vmatprep.subr.mxu0 0.0
    %847 = vmatpush1.msra.mxu0 0.0
    %848 = vmatprep.subr.mxu0 0.0
    %849 = vmatpush1.msra.mxu0 0.0
    %850 = vmatprep.subr.mxu0 0.0
    %851 = vmatpush1.msra.mxu0 0.0
    %852 = vmatprep.subr.mxu0 0.0
    %853 = vmatpush1.msra.mxu0 0.0
    %854 = vmatprep.subr.mxu0 0.0
    %855 = vmatpush1.msra.mxu0 0.0
    %856 = vmatprep.subr.mxu0 0.0
    %857 = vmatpush1.msra.mxu0 0.0
    %858 = vmatprep.subr.mxu0 0.0
    %859 = vmatpush1.msra.mxu0 0.0
    %860 = vmatprep.subr.mxu0 0.0
    %861 = vmatpush1.msra.mxu0 0.0
    %862 = vmatprep.subr.mxu0 0.0
    %863 = vmatpush1.msra.mxu0 0.0
    %864 = vmatprep.subr.mxu0 0.0
    %865 = vmatpush1.msra.mxu0 0.0
    %866 = vmatprep.subr.mxu0 0.0
    %867 = vmatpush1.msra.mxu0 0.0
    %868 = vmatprep.subr.mxu0 0.0
    %869 = vmatpush1.msra.mxu0 0.0
    %870 = vmatprep.subr.mxu0 0.0
    %871 = vmatpush1.msra.mxu0 0.0
    %872 = vmatprep.subr.mxu0 0.0
    %873 = vmatpush1.msra.mxu0 0.0
    %874 = vmatprep.subr.mxu0 0.0
    %875 = vmatpush1.msra.mxu0 0.0
    %876 = vmatprep.subr.mxu0 0.0
    %877 = vmatpush1.msra.mxu0 0.0
    %878 = vmatprep.subr.mxu0 0.0
    %879 = vmatpush1.msra.mxu0 0.0
    %880 = vmatprep.subr.mxu0 0.0
    %881 = vmatpush1.msra.mxu0 0.0
    %882 = vmatprep.subr.mxu0 0.0
    %883 = vmatpush1.msra.mxu0 0.0
    %884 = vmatprep.subr.mxu0 0.0
    %885 = vmatpush1.msra.mxu0 0.0
    %886 = vmatprep.subr.mxu0 0.0
    %887 = vmatpush1.msra.mxu0 0.0
    %888 = vmatprep.mubr.f32.mxu0 0.0
    %889 = vmatmul.mubr.f32.gmra.mrb[0].mxu0 %v822
    %v890 = vpop.f32.mrb[0].mxu0
    %v891 = vadd.f32 %v818, %v890
    %v892 = vpop.f32.mrb[0].mxu0
    %v893 = vadd.f32 %v819, %v892
    %894 = vdwg.mxu0
    %v895 = vmul.f32 %v891, 0.5
    %v896 = vmul.f32 %v893, 0.5
    %v897 = vtanh.pop %v895
    %v898 = vtanh.pop %v896
    %v899 = vmul.f32 %v897, 0.5
    %v900 = vmul.f32 %v898, 0.5
    %v901 = vadd.f32 %v899, 0.5
    %v902 = vadd.f32 %v900, 0.5
    %v903 = vtanh.pop %v893
    %v904 = vmul.f32 %v901, %v812
    %v905 = vmul.f32 %v901, %v903
    %907 = vrot.lane.b32.xlu0 %v905, 64
    %v908 = vpop.permute.xlu0 %907
    %v910 = vadd.f32 %v904, %v908
    %v911 = vtanh.pop %v910
    %v912 = vmul.f32 %v902, %v911
    %914 = vrot.lane.b32.xlu0 %v912, 64
    %v915 = vpop.permute.xlu0 %914
    %v916 = vsel %vm230, %v915, 0
    %918 = vmatprep.subr.mxu0 %v209
    %919 = vmatpush1.msra.mxu0 %v208
    %920 = vmatprep.subr.mxu0 %v211
    %921 = vmatpush1.msra.mxu0 %v210
    %922 = vmatprep.subr.mxu0 %v213
    %923 = vmatpush1.msra.mxu0 %v212
    %924 = vmatprep.subr.mxu0 %v215
    %925 = vmatpush1.msra.mxu0 %v214
    %926 = vmatprep.subr.mxu0 %v217
    %927 = vmatpush1.msra.mxu0 %v216
    %928 = vmatprep.subr.mxu0 %v219
    %929 = vmatpush1.msra.mxu0 %v218
    %930 = vmatprep.subr.mxu0 %v221
    %931 = vmatpush1.msra.mxu0 %v220
    %932 = vmatprep.subr.mxu0 %v223
    %933 = vmatpush1.msra.mxu0 %v222
    %934 = vmatprep.subr.mxu0 0.0
    %935 = vmatpush1.msra.mxu0 0.0
    %936 = vmatprep.subr.mxu0 0.0
    %937 = vmatpush1.msra.mxu0 0.0
    %938 = vmatprep.subr.mxu0 0.0
    %939 = vmatpush1.msra.mxu0 0.0
    %940 = vmatprep.subr.mxu0 0.0
    %941 = vmatpush1.msra.mxu0 0.0
    %942 = vmatprep.subr.mxu0 0.0
    %943 = vmatpush1.msra.mxu0 0.0
    %944 = vmatprep.subr.mxu0 0.0
    %945 = vmatpush1.msra.mxu0 0.0
    %946 = vmatprep.subr.mxu0 0.0
    %947 = vmatpush1.msra.mxu0 0.0
    %948 = vmatprep.subr.mxu0 0.0
    %949 = vmatpush1.msra.mxu0 0.0
    %950 = vmatprep.subr.mxu0 0.0
    %951 = vmatpush1.msra.mxu0 0.0
    %952 = vmatprep.subr.mxu0 0.0
    %953 = vmatpush1.msra.mxu0 0.0
    %954 = vmatprep.subr.mxu0 0.0
    %955 = vmatpush1.msra.mxu0 0.0
    %956 = vmatprep.subr.mxu0 0.0
    %957 = vmatpush1.msra.mxu0 0.0
    %958 = vmatprep.subr.mxu0 0.0
    %959 = vmatpush1.msra.mxu0 0.0
    %960 = vmatprep.subr.mxu0 0.0
    %961 = vmatpush1.msra.mxu0 0.0
    %962 = vmatprep.subr.mxu0 0.0
    %963 = vmatpush1.msra.mxu0 0.0
    %964 = vmatprep.subr.mxu0 0.0
    %965 = vmatpush1.msra.mxu0 0.0
    %966 = vmatprep.subr.mxu0 0.0
    %967 = vmatpush1.msra.mxu0 0.0
    %968 = vmatprep.subr.mxu0 0.0
    %969 = vmatpush1.msra.mxu0 0.0
    %970 = vmatprep.subr.mxu0 0.0
    %971 = vmatpush1.msra.mxu0 0.0
    %972 = vmatprep.subr.mxu0 0.0
    %973 = vmatpush1.msra.mxu0 0.0
    %974 = vmatprep.subr.mxu0 0.0
    %975 = vmatpush1.msra.mxu0 0.0
    %976 = vmatprep.subr.mxu0 0.0
    %977 = vmatpush1.msra.mxu0 0.0
    %978 = vmatprep.subr.mxu0 0.0
    %979 = vmatpush1.msra.mxu0 0.0
    %980 = vmatprep.subr.mxu0 0.0
    %981 = vmatpush1.msra.mxu0 0.0
    %982 = vmatprep.mubr.f32.mxu0 0.0
    %983 = vmatmul.mubr.f32.gmra.mrb[0].mxu0 %v916
    %v984 = vpop.f32.mrb[0].mxu0
    %v985 = vadd.f32 %v79, %v984
    %v986 = vpop.f32.mrb[0].mxu0
    %v987 = vadd.f32 %v83, %v986
    %988 = vdwg.mxu0
    %v989 = vmul.f32 %v985, 0.5
    %v990 = vmul.f32 %v987, 0.5
    %v991 = vtanh.pop %v989
    %v992 = vtanh.pop %v990
    %v993 = vmul.f32 %v991, 0.5
    %v994 = vmul.f32 %v992, 0.5
    %v995 = vadd.f32 %v993, 0.5
    %v996 = vadd.f32 %v994, 0.5
    %v997 = vtanh.pop %v987
    %v998 = vmul.f32 %v995, %v910
    %v999 = vmul.f32 %v995, %v997
    %1001 = vrot.lane.b32.xlu0 %v999, 64
    %v1002 = vpop.permute.xlu0 %1001
    %v1004 = vadd.f32 %v998, %v1002
    %v1005 = vtanh.pop %v1004
    %v1006 = vmul.f32 %v996, %v1005
    %v1007 = vrot.slane %v424, 6
    %v1009 = vrot.slane %v522, 4
    %v1011 = vrot.slane %v616, 2
    %v1013 = vrot.slane %v814, 6
    %v1015 = vrot.slane %v912, 4
    %v1018 = vrot.slane %v1006, 2
    %vm1020 = vcmask 1041408
    %v1021 = vsel %vm1020, %v326, %v1007
    %vm1022 = vcmask 1043456
    %v1023 = vsel %vm1022, %v1021, %v1009
    %vm1024 = vcmask 1045504
    %v1025 = vsel %vm1024, %v1023, %v1011
    %v1026 = vsel %vm1020, %v716, %v1013
    %v1027 = vsel %vm1022, %v1026, %v1015
    %v1028 = vsel %vm1024, %v1027, %v1018
    %v1029 = vld [vmem:[%s4] sm:$0x1]
    %v1031 = vlaneseq
    %v1032 = vshrl.u32 %v1031, 7
    %v1033 = vsub.s32 0, %v1032
    %v1034 = vrot.slane %v1029, %v1033
    %1035 = vrot.lane.b32.xlu0 %v1034, 96
    %v1036 = vpop.permute.xlu0 %1035
    %v1038 = vmul.f32 %v1025, %v1036
    %v1039 = vmul.f32 %v1028, %v1036
    %1042 = vrot.lane.b32.xlu0 %v1038, 32
    %v1043 = vpop.permute.xlu0 %1042
    %1044 = vrot.lane.b32.xlu0 %v1039, 32
    %v1045 = vpop.permute.xlu0 %1044
    %vm1048 = vcmask 261120
    %v1049 = vsel %vm1048, %v1043, 0.0
    %1050 = vadd.xlane.f32.xlu0 %v1049
    %v1051 = vpop.xlane.xlu0 %1050
    %v1052 = vsel %vm1048, %v1045, 0.0
    %1053 = vadd.xlane.f32.xlu0 %v1052
    %v1054 = vpop.xlane.xlu0 %1053
    %v1055 = vld [vmem:[#allocation2] sm:$0x1]
    %v1057 = vlaneseq
    %v1058 = vshrl.u32 %v1057, 7
    %v1059 = vsub.s32 0, %v1058
    %v1060 = vrot.slane %v1055, %v1059
    %v1062 = vadd.f32 %v1051, %v1060
    %v1063 = vadd.f32 %v1054, %v1060
    %v1064 = vmul.f32 %v1062, 0.5
    %v1065 = vmul.f32 %v1063, 0.5
    %v1066 = vtanh.pop %v1064
    %v1067 = vtanh.pop %v1065
    %v1068 = vmul.f32 %v1066, 0.5
    %v1069 = vmul.f32 %v1067, 0.5
    %v1070 = vadd.f32 %v1068, 0.5
    %v1071 = vadd.f32 %v1069, 0.5
    %vm1072 = vcmask 7168
    %1073 = vst.msk [vmem:[%s6] sm:$0xff] %vm1072, %v1070
    %1074 = vst.msk [vmem:[%s6 + $0x8] sm:$0xff] %vm1072, %v1071
    // Predicated region
    $region38: #{neural_network_forward.1} parent=1 // pred_check
      _
    $region39: #{neural_network_forward.1} parent=1 // pred_check_branch
      %1076 = sbr.rel (0) target = $region41
    $region40: #{neural_network_forward.1} parent=1 // pred_region
      _
    $region41: #{neural_network_forward.1} parent=1 // pred_fallthru
      _
    // Predicated region
    $region42: #{neural_network_forward.1} parent=1 // pred_check
      _
    $region43: #{neural_network_forward.1} parent=1 // pred_check_branch
      %1078 = sbr.rel (0) target = $region45
    $region44: #{neural_network_forward.1} parent=1 // pred_region
      _
    $region45: #{neural_network_forward.1} parent=1 // pred_fallthru
      _
    %1079 = vsyncpa [#allocation4], 1
    %1080 = vsyncpa [#allocation6], 1

</llo_original>
